<compile_context>
chip_gen: v7x
topology: tpu7x:2x2x1
jax: 0.10.0
libtpu: 0.0.40
codegen_flags: <defaults>
</compile_context>

<pallas_src>
import jax
import jax.numpy as jnp
from jax import lax
from jax.experimental import pallas as pl
from jax.experimental.pallas import tpu as pltpu


# ---------------------------------------------------------------------------
# in-kernel helper
# ---------------------------------------------------------------------------
def _dw_relu(hp, w, b, k, lout):
    """Depthwise Conv1d on pre-padded rows, + bias + ReLU.

    hp: (R, lout + k - 1) zero-padded input, w: (R, k), b: (R, 1).
    """
    acc = w[:, 0:1] * hp[:, 0:lout]
    for t in range(1, k):
        acc = acc + w[:, t:t + 1] * hp[:, t:t + lout]
    return jnp.maximum(acc + b, 0.0)


# ---------------------------------------------------------------------------
# Pallas kernel: whole feature extractor for one batch block
# ---------------------------------------------------------------------------
def _kernel(xp_ref, w1_ref, b1_ref, w2_ref, b2_ref, w3_ref, b3_ref,
            s1e_ref, s1o_ref, s2e_ref, s2o_ref, out_ref):
    f32 = jnp.float32
    bb, cin, lpad = xp_ref.shape
    L = lpad - 2                              # conv1 output length (k=3, pad=1)
    k1 = w1_ref.shape[1] // cin
    k2 = w2_ref.shape[1]
    k3 = w3_ref.shape[1]
    l2 = s1e_ref.shape[1] - k2 + 1            # conv2 output length
    l3 = s2e_ref.shape[1] - k3 + 1            # conv3 output length

    xp = xp_ref[...].astype(f32)              # (bb, Cin, L+2) pre-padded in wrapper
    w1 = w1_ref[...]                          # (64, k1*Cin), rows duplicated (j -> j//2)

    # ---- conv1: all taps folded into one MXU matmul per batch element + ReLU
    rows = []
    for b in range(bb):
        xs = jnp.concatenate([xp[b, :, t:t + L] for t in range(k1)], axis=0)  # (k1*Cin, L)
        rows.append(jnp.dot(w1, xs, preferred_element_type=f32))              # (64, L)
    h1 = rows[0] if bb == 1 else jnp.concatenate(rows, axis=0)                # (R, L)
    h1 = jnp.maximum(h1 + b1_ref[...], 0.0)

    # ---- pool1 (MaxPool1d(2,2)) fused with conv2 zero-padding --------------
    hp2 = jnp.maximum(jnp.dot(h1, s1e_ref[...], preferred_element_type=f32),
                      jnp.dot(h1, s1o_ref[...], preferred_element_type=f32))  # (R, L/2+2)

    # ---- conv2: Conv1d(32->64, k=5, pad=1, groups=32) == depthwise on duplicated rows
    h2 = _dw_relu(hp2, w2_ref[...], b2_ref[...], k2, l2)                      # (R, l2)

    # ---- pool2 (MaxPool1d(2,2)) fused with conv3 zero-padding --------------
    hp3 = jnp.maximum(jnp.dot(h2, s2e_ref[...], preferred_element_type=f32),
                      jnp.dot(h2, s2o_ref[...], preferred_element_type=f32))  # (R, l2//2+2)

    # ---- conv3: depthwise Conv1d(64->64, k=7, pad=1, groups=64) + ReLU -----
    h3 = _dw_relu(hp3, w3_ref[...], b3_ref[...], k3, l3)                      # (R, l3)

    # ---- AdaptiveAvgPool1d(1): row means, landed lane-major as (1, R) ------
    ones_row = jnp.full((1, l3), 1.0 / l3, dtype=f32)
    means = lax.dot_general(ones_row, h3, (((1,), (1,)), ((), ())),
                            preferred_element_type=f32)                       # (1, R)
    out_ref[...] = means


# ---------------------------------------------------------------------------
# wrapper: parameter re-layout (glue) + pallas_call
# ---------------------------------------------------------------------------
def custom1d_feature_extractor(x, params, block_b=None):
    w1, b1, w2, b2, w3, b3 = params
    B, cin, L = x.shape
    c1, c2, c3 = w1.shape[0], w2.shape[0], w3.shape[0]
    k1, k2, k3 = w1.shape[2], w2.shape[2], w3.shape[2]
    # the PyTorch module hardwires groups=32 (conv2) and groups=64 (conv3)
    assert c1 == 32 and c2 == 64 and c3 == 64 and 2 * c1 == c2 and c2 == c3

    l1 = L // 2                    # after pool1
    l2 = l1 + 2 - k2 + 1           # conv2 output length
    l2p = l2 // 2                  # after pool2
    l3 = l2p + 2 - k3 + 1          # conv3 output length
    assert l2 >= 2 and l2p >= 1 and l3 >= 1, "input length too small for this network"

    if block_b is None:
        # keep >= 2 grid steps when B >= 2 (both v7x TensorCores), cap block at 8
        block_b = max(1, min(8, pl.cdiv(B, 2)))
    grid_b = pl.cdiv(B, block_b)
    b_pad = grid_b * block_b
    R = block_b * c2               # rows per grid step (batch block x 64 channels)

    f32 = jnp.float32
    xf = x.astype(f32)
    if b_pad != B:
        xf = jnp.concatenate([xf, jnp.zeros((b_pad - B, cin, L), f32)], axis=0)
    xp = jnp.pad(xf, ((0, 0), (0, 0), (1, 1)))        # conv1 padding=1, done once here

    # conv1 weight (32, Cin, 3) -> (32, 3*Cin), column index = t*Cin + c, rows duplicated
    # so conv1 directly emits the 64 conv2-input rows in natural channel order.
    w1s = jnp.transpose(w1.astype(f32), (0, 2, 1)).reshape(c1, k1 * cin)
    w1d = jnp.repeat(w1s, 2, axis=0)                                   # (64, 3*Cin)
    b1r = jnp.tile(jnp.repeat(b1.astype(f32), 2), block_b)[:, None]    # (R, 1)
    w2r = jnp.tile(w2[:, 0, :].astype(f32), (block_b, 1))              # (R, k2)
    b2r = jnp.tile(b2.astype(f32), block_b)[:, None]                   # (R, 1)
    w3r = jnp.tile(w3[:, 0, :].astype(f32), (block_b, 1))              # (R, k3)
    b3r = jnp.tile(b3.astype(f32), block_b)[:, None]                   # (R, 1)

    # MaxPool1d(2,2) even/odd selection matrices, with one zero column on each side so the
    # pooled result is already zero-padded for the following conv (hoisted out of kernel).
    def _sel(n, p, parity):
        body = (jnp.arange(n)[:, None] == 2 * jnp.arange(p)[None, :] + parity).astype(f32)
        return jnp.pad(body, ((0, 0), (1, 1)))
    s1e, s1o = _sel(L, l1, 0), _sel(L, l1, 1)          # (L,  l1 + 2)
    s2e, s2o = _sel(l2, l2p, 0), _sel(l2, l2p, 1)      # (l2, l2p + 2)

    def const_spec(a):
        return pl.BlockSpec(a.shape, lambda g, _r=a.ndim: (0,) * _r)

    out = pl.pallas_call(
        _kernel,
        out_shape=jax.ShapeDtypeStruct((grid_b, 1, R), f32),
        grid=(grid_b,),
        in_specs=[
            pl.BlockSpec((block_b, cin, L + 2), lambda g: (g, 0, 0)),   # x (pre-padded)
            const_spec(w1d), const_spec(b1r),                           # conv1
            const_spec(w2r), const_spec(b2r),                           # conv2
            const_spec(w3r), const_spec(b3r),                           # conv3
            const_spec(s1e), const_spec(s1o),                           # pool1 selections
            const_spec(s2e), const_spec(s2o),                           # pool2 selections
        ],
        out_specs=pl.BlockSpec((None, 1, R), lambda g: (g, 0, 0)),
        compiler_params=pltpu.CompilerParams(dimension_semantics=("parallel",)),
    )(xp, w1d, b1r, w2r, b2r, w3r, b3r, s1e, s1o, s2e, s2o)

    # rows inside each step are already (batch, natural-channel) ordered
    return out.reshape(b_pad, c3)[:B]


# ---------------------------------------------------------------------------
# pure-JAX reference (validation only, forced to full f32 precision)
# ---------------------------------------------------------------------------
def reference(x, params):
    w1, b1, w2, b2, w3, b3 = params
    dn = ('NCH', 'OIH', 'NCH')
    hi = lax.Precision.HIGHEST
    y = lax.conv_general_dilated(x, w1, (1,), [(1, 1)], dimension_numbers=dn,
                                 precision=hi)
    y = jnp.maximum(y + b1[None, :, None], 0.0)
    y = lax.reduce_window(y, -jnp.inf, lax.max, (1, 1, 2), (1, 1, 2), 'VALID')
    y = lax.conv_general_dilated(y, w2, (1,), [(1, 1)], dimension_numbers=dn,
                                 feature_group_count=32, precision=hi)
    y = jnp.maximum(y + b2[None, :, None], 0.0)
    y = lax.reduce_window(y, -jnp.inf, lax.max, (1, 1, 2), (1, 1, 2), 'VALID')
    y = lax.conv_general_dilated(y, w3, (1,), [(1, 1)], dimension_numbers=dn,
                                 feature_group_count=64, precision=hi)
    y = jnp.maximum(y + b3[None, :, None], 0.0)
    return jnp.mean(y, axis=-1)


if __name__ == "__main__":
    key = jax.random.PRNGKey(0)
    B, im_chans, L = 2, 4, 64
    out_chans = (32, 64, 64)        # conv2/conv3 hardcode 32/64 groups
    ks = jax.random.split(key, 7)

    def uinit(k, shape, fan_in):
        bound = 1.0 / float(fan_in) ** 0.5
        return jax.random.uniform(k, shape, jnp.float32, -bound, bound)

    x = jax.random.normal(ks[0], (B, im_chans, L), jnp.float32)
    w1 = uinit(ks[1], (out_chans[0], im_chans, 3), im_chans * 3)
    b1 = uinit(ks[2], (out_chans[0],), im_chans * 3)
    w2 = uinit(ks[3], (out_chans[1], 1, 5), 1 * 5)
    b2 = uinit(ks[4], (out_chans[1],), 1 * 5)
    w3 = uinit(ks[5], (out_chans[2], 1, 7), 1 * 7)
    b3 = uinit(ks[6], (out_chans[2],), 1 * 7)
    params = (w1, b1, w2, b2, w3, b3)

    out = jax.block_until_ready(custom1d_feature_extractor(x, params))
    assert out.shape == (B, out_chans[2]), out.shape

    ref = jax.block_until_ready(reference(x, params))
    max_err = float(jnp.max(jnp.abs(out - ref)))
    # Tolerance covers TPU default (bf16-input) matmul precision on the kernel's MXU
    # paths vs the HIGHEST-precision reference; structural errors are >= 3e-2.
    if not jnp.allclose(out, ref, atol=1e-2, rtol=1e-2):
        raise AssertionError(f"kernel/reference mismatch, max abs err = {max_err}")

    print("KERNEL_OK")
</pallas_src>

<mosaic_0001>
module attributes {stable_mosaic.version = 11 : i64} {
  func.func @_kernel(%arg0: i32, %arg1: memref<1x4x66xf32, #tpu.memory_space<vmem>>, %arg2: memref<64x12xf32, #tpu.memory_space<vmem>>, %arg3: memref<64x1xf32, #tpu.memory_space<vmem>>, %arg4: memref<64x5xf32, #tpu.memory_space<vmem>>, %arg5: memref<64x1xf32, #tpu.memory_space<vmem>>, %arg6: memref<64x7xf32, #tpu.memory_space<vmem>>, %arg7: memref<64x1xf32, #tpu.memory_space<vmem>>, %arg8: memref<64x34xf32, #tpu.memory_space<vmem>>, %arg9: memref<64x34xf32, #tpu.memory_space<vmem>>, %arg10: memref<30x17xf32, #tpu.memory_space<vmem>>, %arg11: memref<30x17xf32, #tpu.memory_space<vmem>>, %arg12: memref<1x1x64xf32, #tpu.memory_space<vmem>>) attributes {dimension_semantics = [#tpu.dimension_semantics<parallel>], iteration_bounds = array<i64: 2>, scalar_prefetch = 0 : i64, scratch_operands = 0 : i64, tpu.core_type = #tpu.core_type<tc>, window_params = [{transform_indices = @transform_0, window_bounds = array<i64: 1, 4, 66>}, {pipeline_mode = #tpu.pipeline_mode<synchronous>, transform_indices = @transform_1, window_bounds = array<i64: 64, 12>}, {pipeline_mode = #tpu.pipeline_mode<synchronous>, transform_indices = @transform_2, window_bounds = array<i64: 64, 1>}, {pipeline_mode = #tpu.pipeline_mode<synchronous>, transform_indices = @transform_3, window_bounds = array<i64: 64, 5>}, {pipeline_mode = #tpu.pipeline_mode<synchronous>, transform_indices = @transform_4, window_bounds = array<i64: 64, 1>}, {pipeline_mode = #tpu.pipeline_mode<synchronous>, transform_indices = @transform_5, window_bounds = array<i64: 64, 7>}, {pipeline_mode = #tpu.pipeline_mode<synchronous>, transform_indices = @transform_6, window_bounds = array<i64: 64, 1>}, {pipeline_mode = #tpu.pipeline_mode<synchronous>, transform_indices = @transform_7, window_bounds = array<i64: 64, 34>}, {pipeline_mode = #tpu.pipeline_mode<synchronous>, transform_indices = @transform_8, window_bounds = array<i64: 64, 34>}, {pipeline_mode = #tpu.pipeline_mode<synchronous>, transform_indices = @transform_9, window_bounds = array<i64: 30, 17>}, {pipeline_mode = #tpu.pipeline_mode<synchronous>, transform_indices = @transform_10, window_bounds = array<i64: 30, 17>}, {transform_indices = @transform_11, window_bounds = array<i64: 1, 1, 64>}]} {
    %c0 = arith.constant 0 : index
    %c0_0 = arith.constant 0 : index
    %c0_1 = arith.constant 0 : index
    %0 = vector.load %arg1[%c0, %c0_0, %c0_1] : memref<1x4x66xf32, #tpu.memory_space<vmem>>, vector<1x4x66xf32>
    %c0_2 = arith.constant 0 : index
    %c0_3 = arith.constant 0 : index
    %1 = vector.load %arg2[%c0_2, %c0_3] : memref<64x12xf32, #tpu.memory_space<vmem>>, vector<64x12xf32>
    %2 = vector.extract_strided_slice %0 {offsets = [0, 0, 0], sizes = [1, 4, 64], strides = [1, 1, 1]} : vector<1x4x66xf32> to vector<1x4x64xf32>
    %3 = vector.shape_cast %2 : vector<1x4x64xf32> to vector<4x64xf32>
    %4 = vector.extract_strided_slice %0 {offsets = [0, 0, 1], sizes = [1, 4, 64], strides = [1, 1, 1]} : vector<1x4x66xf32> to vector<1x4x64xf32>
    %5 = vector.shape_cast %4 : vector<1x4x64xf32> to vector<4x64xf32>
    %6 = vector.extract_strided_slice %0 {offsets = [0, 0, 2], sizes = [1, 4, 64], strides = [1, 1, 1]} : vector<1x4x66xf32> to vector<1x4x64xf32>
    %7 = vector.shape_cast %6 : vector<1x4x64xf32> to vector<4x64xf32>
    %8 = tpu.concatenate %3, %5, %7 in 0 : vector<4x64xf32>, vector<4x64xf32>, vector<4x64xf32> -> vector<12x64xf32>
    %cst = arith.constant dense<0.000000e+00> : vector<64x64xf32>
    %9 = tpu.matmul %1, %8, %cst {dimension_numbers = #tpu.dot_dimension_numbers<[1], [0], [0], [1], [0, 0, 1, 1], [], []>} : vector<64x12xf32>, vector<12x64xf32>, vector<64x64xf32> -> vector<64x64xf32>
    %c0_4 = arith.constant 0 : index
    %c0_5 = arith.constant 0 : index
    %10 = vector.load %arg3[%c0_4, %c0_5] : memref<64x1xf32, #tpu.memory_space<vmem>>, vector<64x1xf32>
    %11 = vector.broadcast %10 : vector<64x1xf32> to vector<64x64xf32>
    %12 = arith.addf %9, %11 : vector<64x64xf32>
    %cst_6 = arith.constant 0.000000e+00 : f32
    %13 = vector.broadcast %cst_6 : f32 to vector<64x64xf32>
    %14 = arith.maximumf %12, %13 : vector<64x64xf32>
    %c0_7 = arith.constant 0 : index
    %c0_8 = arith.constant 0 : index
    %15 = vector.load %arg8[%c0_7, %c0_8] : memref<64x34xf32, #tpu.memory_space<vmem>>, vector<64x34xf32>
    %cst_9 = arith.constant dense<0.000000e+00> : vector<64x34xf32>
    %16 = tpu.matmul %14, %15, %cst_9 {dimension_numbers = #tpu.dot_dimension_numbers<[1], [0], [0], [1], [0, 0, 1, 1], [], []>} : vector<64x64xf32>, vector<64x34xf32>, vector<64x34xf32> -> vector<64x34xf32>
    %c0_10 = arith.constant 0 : index
    %c0_11 = arith.constant 0 : index
    %17 = vector.load %arg9[%c0_10, %c0_11] : memref<64x34xf32, #tpu.memory_space<vmem>>, vector<64x34xf32>
    %cst_12 = arith.constant dense<0.000000e+00> : vector<64x34xf32>
    %18 = tpu.matmul %14, %17, %cst_12 {dimension_numbers = #tpu.dot_dimension_numbers<[1], [0], [0], [1], [0, 0, 1, 1], [], []>} : vector<64x64xf32>, vector<64x34xf32>, vector<64x34xf32> -> vector<64x34xf32>
    %19 = arith.maximumf %16, %18 : vector<64x34xf32>
    %c0_13 = arith.constant 0 : index
    %c0_14 = arith.constant 0 : index
    %20 = vector.load %arg4[%c0_13, %c0_14] : memref<64x5xf32, #tpu.memory_space<vmem>>, vector<64x5xf32>
    %c0_15 = arith.constant 0 : index
    %c0_16 = arith.constant 0 : index
    %21 = vector.load %arg5[%c0_15, %c0_16] : memref<64x1xf32, #tpu.memory_space<vmem>>, vector<64x1xf32>
    %22 = vector.extract_strided_slice %20 {offsets = [0, 0], sizes = [64, 1], strides = [1, 1]} : vector<64x5xf32> to vector<64x1xf32>
    %23 = vector.extract_strided_slice %19 {offsets = [0, 0], sizes = [64, 30], strides = [1, 1]} : vector<64x34xf32> to vector<64x30xf32>
    %24 = vector.broadcast %22 : vector<64x1xf32> to vector<64x30xf32>
    %25 = arith.mulf %24, %23 : vector<64x30xf32>
    %26 = vector.extract_strided_slice %20 {offsets = [0, 1], sizes = [64, 1], strides = [1, 1]} : vector<64x5xf32> to vector<64x1xf32>
    %27 = vector.extract_strided_slice %19 {offsets = [0, 1], sizes = [64, 30], strides = [1, 1]} : vector<64x34xf32> to vector<64x30xf32>
    %28 = vector.broadcast %26 : vector<64x1xf32> to vector<64x30xf32>
    %29 = arith.mulf %28, %27 : vector<64x30xf32>
    %30 = arith.addf %25, %29 : vector<64x30xf32>
    %31 = vector.extract_strided_slice %20 {offsets = [0, 2], sizes = [64, 1], strides = [1, 1]} : vector<64x5xf32> to vector<64x1xf32>
    %32 = vector.extract_strided_slice %19 {offsets = [0, 2], sizes = [64, 30], strides = [1, 1]} : vector<64x34xf32> to vector<64x30xf32>
    %33 = vector.broadcast %31 : vector<64x1xf32> to vector<64x30xf32>
    %34 = arith.mulf %33, %32 : vector<64x30xf32>
    %35 = arith.addf %30, %34 : vector<64x30xf32>
    %36 = vector.extract_strided_slice %20 {offsets = [0, 3], sizes = [64, 1], strides = [1, 1]} : vector<64x5xf32> to vector<64x1xf32>
    %37 = vector.extract_strided_slice %19 {offsets = [0, 3], sizes = [64, 30], strides = [1, 1]} : vector<64x34xf32> to vector<64x30xf32>
    %38 = vector.broadcast %36 : vector<64x1xf32> to vector<64x30xf32>
    %39 = arith.mulf %38, %37 : vector<64x30xf32>
    %40 = arith.addf %35, %39 : vector<64x30xf32>
    %41 = vector.extract_strided_slice %20 {offsets = [0, 4], sizes = [64, 1], strides = [1, 1]} : vector<64x5xf32> to vector<64x1xf32>
    %42 = vector.extract_strided_slice %19 {offsets = [0, 4], sizes = [64, 30], strides = [1, 1]} : vector<64x34xf32> to vector<64x30xf32>
    %43 = vector.broadcast %41 : vector<64x1xf32> to vector<64x30xf32>
    %44 = arith.mulf %43, %42 : vector<64x30xf32>
    %45 = arith.addf %40, %44 : vector<64x30xf32>
    %46 = vector.broadcast %21 : vector<64x1xf32> to vector<64x30xf32>
    %47 = arith.addf %45, %46 : vector<64x30xf32>
    %cst_17 = arith.constant 0.000000e+00 : f32
    %48 = vector.broadcast %cst_17 : f32 to vector<64x30xf32>
    %49 = arith.maximumf %47, %48 : vector<64x30xf32>
    %c0_18 = arith.constant 0 : index
    %c0_19 = arith.constant 0 : index
    %50 = vector.load %arg10[%c0_18, %c0_19] : memref<30x17xf32, #tpu.memory_space<vmem>>, vector<30x17xf32>
    %cst_20 = arith.constant dense<0.000000e+00> : vector<64x17xf32>
    %51 = tpu.matmul %49, %50, %cst_20 {dimension_numbers = #tpu.dot_dimension_numbers<[1], [0], [0], [1], [0, 0, 1, 1], [], []>} : vector<64x30xf32>, vector<30x17xf32>, vector<64x17xf32> -> vector<64x17xf32>
    %c0_21 = arith.constant 0 : index
    %c0_22 = arith.constant 0 : index
    %52 = vector.load %arg11[%c0_21, %c0_22] : memref<30x17xf32, #tpu.memory_space<vmem>>, vector<30x17xf32>
    %cst_23 = arith.constant dense<0.000000e+00> : vector<64x17xf32>
    %53 = tpu.matmul %49, %52, %cst_23 {dimension_numbers = #tpu.dot_dimension_numbers<[1], [0], [0], [1], [0, 0, 1, 1], [], []>} : vector<64x30xf32>, vector<30x17xf32>, vector<64x17xf32> -> vector<64x17xf32>
    %54 = arith.maximumf %51, %53 : vector<64x17xf32>
    %c0_24 = arith.constant 0 : index
    %c0_25 = arith.constant 0 : index
    %55 = vector.load %arg6[%c0_24, %c0_25] : memref<64x7xf32, #tpu.memory_space<vmem>>, vector<64x7xf32>
    %c0_26 = arith.constant 0 : index
    %c0_27 = arith.constant 0 : index
    %56 = vector.load %arg7[%c0_26, %c0_27] : memref<64x1xf32, #tpu.memory_space<vmem>>, vector<64x1xf32>
    %57 = vector.extract_strided_slice %55 {offsets = [0, 0], sizes = [64, 1], strides = [1, 1]} : vector<64x7xf32> to vector<64x1xf32>
    %58 = vector.extract_strided_slice %54 {offsets = [0, 0], sizes = [64, 11], strides = [1, 1]} : vector<64x17xf32> to vector<64x11xf32>
    %59 = vector.broadcast %57 : vector<64x1xf32> to vector<64x11xf32>
    %60 = arith.mulf %59, %58 : vector<64x11xf32>
    %61 = vector.extract_strided_slice %55 {offsets = [0, 1], sizes = [64, 1], strides = [1, 1]} : vector<64x7xf32> to vector<64x1xf32>
    %62 = vector.extract_strided_slice %54 {offsets = [0, 1], sizes = [64, 11], strides = [1, 1]} : vector<64x17xf32> to vector<64x11xf32>
    %63 = vector.broadcast %61 : vector<64x1xf32> to vector<64x11xf32>
    %64 = arith.mulf %63, %62 : vector<64x11xf32>
    %65 = arith.addf %60, %64 : vector<64x11xf32>
    %66 = vector.extract_strided_slice %55 {offsets = [0, 2], sizes = [64, 1], strides = [1, 1]} : vector<64x7xf32> to vector<64x1xf32>
    %67 = vector.extract_strided_slice %54 {offsets = [0, 2], sizes = [64, 11], strides = [1, 1]} : vector<64x17xf32> to vector<64x11xf32>
    %68 = vector.broadcast %66 : vector<64x1xf32> to vector<64x11xf32>
    %69 = arith.mulf %68, %67 : vector<64x11xf32>
    %70 = arith.addf %65, %69 : vector<64x11xf32>
    %71 = vector.extract_strided_slice %55 {offsets = [0, 3], sizes = [64, 1], strides = [1, 1]} : vector<64x7xf32> to vector<64x1xf32>
    %72 = vector.extract_strided_slice %54 {offsets = [0, 3], sizes = [64, 11], strides = [1, 1]} : vector<64x17xf32> to vector<64x11xf32>
    %73 = vector.broadcast %71 : vector<64x1xf32> to vector<64x11xf32>
    %74 = arith.mulf %73, %72 : vector<64x11xf32>
    %75 = arith.addf %70, %74 : vector<64x11xf32>
    %76 = vector.extract_strided_slice %55 {offsets = [0, 4], sizes = [64, 1], strides = [1, 1]} : vector<64x7xf32> to vector<64x1xf32>
    %77 = vector.extract_strided_slice %54 {offsets = [0, 4], sizes = [64, 11], strides = [1, 1]} : vector<64x17xf32> to vector<64x11xf32>
    %78 = vector.broadcast %76 : vector<64x1xf32> to vector<64x11xf32>
    %79 = arith.mulf %78, %77 : vector<64x11xf32>
    %80 = arith.addf %75, %79 : vector<64x11xf32>
    %81 = vector.extract_strided_slice %55 {offsets = [0, 5], sizes = [64, 1], strides = [1, 1]} : vector<64x7xf32> to vector<64x1xf32>
    %82 = vector.extract_strided_slice %54 {offsets = [0, 5], sizes = [64, 11], strides = [1, 1]} : vector<64x17xf32> to vector<64x11xf32>
    %83 = vector.broadcast %81 : vector<64x1xf32> to vector<64x11xf32>
    %84 = arith.mulf %83, %82 : vector<64x11xf32>
    %85 = arith.addf %80, %84 : vector<64x11xf32>
    %86 = vector.extract_strided_slice %55 {offsets = [0, 6], sizes = [64, 1], strides = [1, 1]} : vector<64x7xf32> to vector<64x1xf32>
    %87 = vector.extract_strided_slice %54 {offsets = [0, 6], sizes = [64, 11], strides = [1, 1]} : vector<64x17xf32> to vector<64x11xf32>
    %88 = vector.broadcast %86 : vector<64x1xf32> to vector<64x11xf32>
    %89 = arith.mulf %88, %87 : vector<64x11xf32>
    %90 = arith.addf %85, %89 : vector<64x11xf32>
    %91 = vector.broadcast %56 : vector<64x1xf32> to vector<64x11xf32>
    %92 = arith.addf %90, %91 : vector<64x11xf32>
    %cst_28 = arith.constant 0.000000e+00 : f32
    %93 = vector.broadcast %cst_28 : f32 to vector<64x11xf32>
    %94 = arith.maximumf %92, %93 : vector<64x11xf32>
    %cst_29 = arith.constant 0.0909090936 : f32
    %95 = vector.broadcast %cst_29 : f32 to vector<1x11xf32>
    %cst_30 = arith.constant dense<0.000000e+00> : vector<1x64xf32>
    %96 = tpu.matmul %95, %94, %cst_30 {dimension_numbers = #tpu.dot_dimension_numbers<[1], [1], [0], [0], [0, 0, 1, 0], [], []>} : vector<1x11xf32>, vector<64x11xf32>, vector<1x64xf32> -> vector<1x64xf32>
    %c0_31 = arith.constant 0 : index
    %c0_32 = arith.constant 0 : index
    %c0_33 = arith.constant 0 : index
    %97 = vector.load %arg12[%c0_31, %c0_32, %c0_33] : memref<1x1x64xf32, #tpu.memory_space<vmem>>, vector<1x1x64xf32>
    %98 = vector.shape_cast %97 : vector<1x1x64xf32> to vector<1x64xf32>
    %99 = vector.shape_cast %96 : vector<1x64xf32> to vector<1x1x64xf32>
    tpu.vector_store %arg12[%c0_31, %c0_32, %c0_33], %99 {strides = array<i32>} : memref<1x1x64xf32, #tpu.memory_space<vmem>>, vector<1x1x64xf32>,
    return
  }
  func.func @transform_0(%arg0: i32) -> (i32, i32, i32) {
    %c0_i32 = arith.constant 0 : i32
    %c0_i32_0 = arith.constant 0 : i32
    %c0_i32_1 = arith.constant 0 : i32
    return %arg0, %c0_i32, %c0_i32_0 : i32, i32, i32
  }
  func.func @transform_1(%arg0: i32) -> (i32, i32) {
    %c0_i32 = arith.constant 0 : i32
    %c0_i32_0 = arith.constant 0 : i32
    %c0_i32_1 = arith.constant 0 : i32
    return %c0_i32, %c0_i32_0 : i32, i32
  }
  func.func @transform_2(%arg0: i32) -> (i32, i32) {
    %c0_i32 = arith.constant 0 : i32
    %c0_i32_0 = arith.constant 0 : i32
    %c0_i32_1 = arith.constant 0 : i32
    return %c0_i32, %c0_i32_0 : i32, i32
  }
  func.func @transform_3(%arg0: i32) -> (i32, i32) {
    %c0_i32 = arith.constant 0 : i32
    %c0_i32_0 = arith.constant 0 : i32
    %c0_i32_1 = arith.constant 0 : i32
    return %c0_i32, %c0_i32_0 : i32, i32
  }
  func.func @transform_4(%arg0: i32) -> (i32, i32) {
    %c0_i32 = arith.constant 0 : i32
    %c0_i32_0 = arith.constant 0 : i32
    %c0_i32_1 = arith.constant 0 : i32
    return %c0_i32, %c0_i32_0 : i32, i32
  }
  func.func @transform_5(%arg0: i32) -> (i32, i32) {
    %c0_i32 = arith.constant 0 : i32
    %c0_i32_0 = arith.constant 0 : i32
    %c0_i32_1 = arith.constant 0 : i32
    return %c0_i32, %c0_i32_0 : i32, i32
  }
  func.func @transform_6(%arg0: i32) -> (i32, i32) {
    %c0_i32 = arith.constant 0 : i32
    %c0_i32_0 = arith.constant 0 : i32
    %c0_i32_1 = arith.constant 0 : i32
    return %c0_i32, %c0_i32_0 : i32, i32
  }
  func.func @transform_7(%arg0: i32) -> (i32, i32) {
    %c0_i32 = arith.constant 0 : i32
    %c0_i32_0 = arith.constant 0 : i32
    %c0_i32_1 = arith.constant 0 : i32
    return %c0_i32, %c0_i32_0 : i32, i32
  }
  func.func @transform_8(%arg0: i32) -> (i32, i32) {
    %c0_i32 = arith.constant 0 : i32
    %c0_i32_0 = arith.constant 0 : i32
    %c0_i32_1 = arith.constant 0 : i32
    return %c0_i32, %c0_i32_0 : i32, i32
  }
  func.func @transform_9(%arg0: i32) -> (i32, i32) {
    %c0_i32 = arith.constant 0 : i32
    %c0_i32_0 = arith.constant 0 : i32
    %c0_i32_1 = arith.constant 0 : i32
    return %c0_i32, %c0_i32_0 : i32, i32
  }
  func.func @transform_10(%arg0: i32) -> (i32, i32) {
    %c0_i32 = arith.constant 0 : i32
    %c0_i32_0 = arith.constant 0 : i32
    %c0_i32_1 = arith.constant 0 : i32
    return %c0_i32, %c0_i32_0 : i32, i32
  }
  func.func @transform_11(%arg0: i32) -> (i32, i32, i32) {
    %c0_i32 = arith.constant 0 : i32
    %c0_i32_0 = arith.constant 0 : i32
    %c0_i32_1 = arith.constant 0 : i32
    return %arg0, %c0_i32, %c0_i32_0 : i32, i32, i32
  }
}

</mosaic_0001>

<llo_original>
// kernel: tpu_custom_call.1
$region0: #{tpu_custom_call.1}
  #allocation0 [shape = 'u32[]', space=smem, size = 0x4, offset = 0x4, fixed_abs, tag = 'smem constant byte address 0x4 - core index']
  #allocation1 [shape = 'u32[144,128]{1,0:T(1,128)}', space=vmem, size = 0x12000, scoped, tag = 'internal scratch']
  %s0 = inlined_call_operand.vmem [shape: f32[2,4,66], index: 0, kind: input, shape index: {}]
  %s1 = inlined_call_operand.vmem [shape: f32[64,12], index: 1, kind: input, shape index: {}]
  %s2 = inlined_call_operand.vmem [shape: f32[64,1], index: 2, kind: input, shape index: {}]
  %s3 = inlined_call_operand.vmem [shape: f32[64,5], index: 3, kind: input, shape index: {}]
  %s4 = inlined_call_operand.vmem [shape: f32[64,1], index: 4, kind: input, shape index: {}]
  %s5 = inlined_call_operand.vmem [shape: f32[64,7], index: 5, kind: input, shape index: {}]
  %s6 = inlined_call_operand.vmem [shape: f32[64,1], index: 6, kind: input, shape index: {}]
  %s7 = inlined_call_operand.vmem [shape: f32[64,34], index: 7, kind: input, shape index: {}]
  %s8 = inlined_call_operand.vmem [shape: f32[64,34], index: 8, kind: input, shape index: {}]
  %s9 = inlined_call_operand.vmem [shape: f32[30,17], index: 9, kind: input, shape index: {}]
  %s10 = inlined_call_operand.vmem [shape: f32[30,17], index: 10, kind: input, shape index: {}]
  %s11 = inlined_call_operand.hbm [shape: f32[2,1,64], index: 11, kind: output, shape index: {}]
  %s12 = sld [smem:[#allocation0]]
  $region77: #{tpu_custom_call.1} parent=0
    _
  %s14 = ssub.s32 1, %s12
  %s15 = scalar_select 0, %s14, %s12
  $region1: #{tpu_custom_call.1} parent=0
    #allocation2 [shape = 'u8[1024]{0}', space=vmem, size = 0x400, scoped, tag = 'output window, operand 0']
    #allocation3 [shape = 's32[2]{0}', space=sflag, size = 0x8, scoped, tag = 'scoped memory for tpu_custom_call.1']
    %16 = vsyncpa [#allocation3], 0
    %s17 = scalar_lea.sflag [#allocation3], 1
    %18 = vsyncpa %s17, 0
    loop: start=0, step=1, limit=4
    $region2: #{tpu_custom_call.1} parent=1 // loop_pre_header
      _
    $region3: #{tpu_custom_call.1} parent=1 // loop_header
      %s20 = sphi 0, %s24
      %p21 = scmp.ge.s32.totalorder %s20, 4
      %s30 = sphi 0, %s32
      %s33 = sphi 0, %s30
      %s34 = sphi 0, %s33
      %s50 = sphi 0, %s34
      %s54 = sphi 0, %s54
      %s56 = sphi 0, %s54
      %s57 = sphi 0, %s56
      %s71 = sphi 0, %s57
      %s75 = sphi 0, %s75
      %s77 = sphi 0, %s75
      %s78 = sphi 0, %s77
      %s92 = sphi 0, %s78
      %s96 = sphi 0, %s96
      %s98 = sphi 0, %s96
      %s99 = sphi 0, %s98
      %s113 = sphi 0, %s99
      %s117 = sphi 0, %s117
      %s119 = sphi 0, %s117
      %s120 = sphi 0, %s119
      %s134 = sphi 0, %s120
      %s138 = sphi 0, %s138
      %s140 = sphi 0, %s138
      %s141 = sphi 0, %s140
      %s155 = sphi 0, %s141
      %s159 = sphi 0, %s159
      %s161 = sphi 0, %s159
      %s162 = sphi 0, %s161
      %s176 = sphi 0, %s162
      %s180 = sphi 0, %s180
      %s182 = sphi 0, %s180
      %s183 = sphi 0, %s182
      %s197 = sphi 0, %s183
      %s201 = sphi 0, %s201
      %s203 = sphi 0, %s201
      %s204 = sphi 0, %s203
      %s218 = sphi 0, %s204
      %s222 = sphi 0, %s222
      %s224 = sphi 0, %s222
      %s225 = sphi 0, %s224
      %s239 = sphi 0, %s225
      %s243 = sphi 0, %s243
      %s245 = sphi 0, %s243
      %s246 = sphi 0, %s245
      %s260 = sphi 0, %s246
      %s266 = sphi 0, %s268
      %s269 = sphi 0, %s266
      %s270 = sphi 0, %s269
      %s286 = sphi 0, %s270
    $region4: #{tpu_custom_call.1} parent=1 // loop_header_branch
      %23 = sbr.rel (%p21) target = $region8
    $region5: #{tpu_custom_call.1} parent=1 // loop_body
      %s25 = ssub.s32 %s20, 1
      %s26 = ssub.s32 %s20, 2
      %s27 = sadd.s32 %s20, 1
      %s28 = ssub.s32 %s20, %s27
      %p29 = scmp.eq.s32.totalorder %s28, 0
      %s31 = sadd.s32 %s30, 1
      %s32 = scalar_select %p29, %s30, %s31
      %p35 = pneg %p29
      %p36 = scmp.eq.s32.totalorder %s20, 1
      %p37 = por %p35, %p36
      %p38 = scmp.ne.s32.totalorder %s30, %s33
      %p39 = scmp.eq.s32.totalorder %s20, 0
      %p40 = por %p38, %p39
      %p41 = scmp.ne.s32.totalorder %s30, %s33
      %p42 = scmp.eq.s32.totalorder %s25, 1
      %p43 = por %p41, %p42
      %p44 = scmp.ne.s32.totalorder %s33, %s34
      %p45 = scmp.eq.s32.totalorder %s25, 0
      %p46 = por %p44, %p45
      %p47 = scmp.ne.s32.totalorder %s33, %s34
      %p48 = scmp.eq.s32.totalorder %s26, 1
      %p49 = por %p47, %p48
      %p51 = scmp.ne.s32.totalorder %s34, %s50
      %p52 = scmp.eq.s32.totalorder %s26, 0
      %p53 = por %p51, %p52
      %s55 = sadd.s32 %s54, 1
      %p58 = scmp.eq.s32.totalorder %s20, 1
      %p59 = scmp.ne.s32.totalorder %s54, %s56
      %p60 = scmp.eq.s32.totalorder %s20, 0
      %p61 = por %p59, %p60
      %p62 = scmp.ne.s32.totalorder %s54, %s56
      %p63 = scmp.eq.s32.totalorder %s25, 1
      %p64 = por %p62, %p63
      %p65 = scmp.ne.s32.totalorder %s56, %s57
      %p66 = scmp.eq.s32.totalorder %s25, 0
      %p67 = por %p65, %p66
      %p68 = scmp.ne.s32.totalorder %s56, %s57
      %p69 = scmp.eq.s32.totalorder %s26, 1
      %p70 = por %p68, %p69
      %p72 = scmp.ne.s32.totalorder %s57, %s71
      %p73 = scmp.eq.s32.totalorder %s26, 0
      %p74 = por %p72, %p73
      %s76 = sadd.s32 %s75, 1
      %p79 = scmp.eq.s32.totalorder %s20, 1
      %p80 = scmp.ne.s32.totalorder %s75, %s77
      %p81 = scmp.eq.s32.totalorder %s20, 0
      %p82 = por %p80, %p81
      %p83 = scmp.ne.s32.totalorder %s75, %s77
      %p84 = scmp.eq.s32.totalorder %s25, 1
      %p85 = por %p83, %p84
      %p86 = scmp.ne.s32.totalorder %s77, %s78
      %p87 = scmp.eq.s32.totalorder %s25, 0
      %p88 = por %p86, %p87
      %p89 = scmp.ne.s32.totalorder %s77, %s78
      %p90 = scmp.eq.s32.totalorder %s26, 1
      %p91 = por %p89, %p90
      %p93 = scmp.ne.s32.totalorder %s78, %s92
      %p94 = scmp.eq.s32.totalorder %s26, 0
      %p95 = por %p93, %p94
      %s97 = sadd.s32 %s96, 1
      %p100 = scmp.eq.s32.totalorder %s20, 1
      %p101 = scmp.ne.s32.totalorder %s96, %s98
      %p102 = scmp.eq.s32.totalorder %s20, 0
      %p103 = por %p101, %p102
      %p104 = scmp.ne.s32.totalorder %s96, %s98
      %p105 = scmp.eq.s32.totalorder %s25, 1
      %p106 = por %p104, %p105
      %p107 = scmp.ne.s32.totalorder %s98, %s99
      %p108 = scmp.eq.s32.totalorder %s25, 0
      %p109 = por %p107, %p108
      %p110 = scmp.ne.s32.totalorder %s98, %s99
      %p111 = scmp.eq.s32.totalorder %s26, 1
      %p112 = por %p110, %p111
      %p114 = scmp.ne.s32.totalorder %s99, %s113
      %p115 = scmp.eq.s32.totalorder %s26, 0
      %p116 = por %p114, %p115
      %s118 = sadd.s32 %s117, 1
      %p121 = scmp.eq.s32.totalorder %s20, 1
      %p122 = scmp.ne.s32.totalorder %s117, %s119
      %p123 = scmp.eq.s32.totalorder %s20, 0
      %p124 = por %p122, %p123
      %p125 = scmp.ne.s32.totalorder %s117, %s119
      %p126 = scmp.eq.s32.totalorder %s25, 1
      %p127 = por %p125, %p126
      %p128 = scmp.ne.s32.totalorder %s119, %s120
      %p129 = scmp.eq.s32.totalorder %s25, 0
      %p130 = por %p128, %p129
      %p131 = scmp.ne.s32.totalorder %s119, %s120
      %p132 = scmp.eq.s32.totalorder %s26, 1
      %p133 = por %p131, %p132
      %p135 = scmp.ne.s32.totalorder %s120, %s134
      %p136 = scmp.eq.s32.totalorder %s26, 0
      %p137 = por %p135, %p136
      %s139 = sadd.s32 %s138, 1
      %p142 = scmp.eq.s32.totalorder %s20, 1
      %p143 = scmp.ne.s32.totalorder %s138, %s140
      %p144 = scmp.eq.s32.totalorder %s20, 0
      %p145 = por %p143, %p144
      %p146 = scmp.ne.s32.totalorder %s138, %s140
      %p147 = scmp.eq.s32.totalorder %s25, 1
      %p148 = por %p146, %p147
      %p149 = scmp.ne.s32.totalorder %s140, %s141
      %p150 = scmp.eq.s32.totalorder %s25, 0
      %p151 = por %p149, %p150
      %p152 = scmp.ne.s32.totalorder %s140, %s141
      %p153 = scmp.eq.s32.totalorder %s26, 1
      %p154 = por %p152, %p153
      %p156 = scmp.ne.s32.totalorder %s141, %s155
      %p157 = scmp.eq.s32.totalorder %s26, 0
      %p158 = por %p156, %p157
      %s160 = sadd.s32 %s159, 1
      %p163 = scmp.eq.s32.totalorder %s20, 1
      %p164 = scmp.ne.s32.totalorder %s159, %s161
      %p165 = scmp.eq.s32.totalorder %s20, 0
      %p166 = por %p164, %p165
      %p167 = scmp.ne.s32.totalorder %s159, %s161
      %p168 = scmp.eq.s32.totalorder %s25, 1
      %p169 = por %p167, %p168
      %p170 = scmp.ne.s32.totalorder %s161, %s162
      %p171 = scmp.eq.s32.totalorder %s25, 0
      %p172 = por %p170, %p171
      %p173 = scmp.ne.s32.totalorder %s161, %s162
      %p174 = scmp.eq.s32.totalorder %s26, 1
      %p175 = por %p173, %p174
      %p177 = scmp.ne.s32.totalorder %s162, %s176
      %p178 = scmp.eq.s32.totalorder %s26, 0
      %p179 = por %p177, %p178
      %s181 = sadd.s32 %s180, 1
      %p184 = scmp.eq.s32.totalorder %s20, 1
      %p185 = scmp.ne.s32.totalorder %s180, %s182
      %p186 = scmp.eq.s32.totalorder %s20, 0
      %p187 = por %p185, %p186
      %p188 = scmp.ne.s32.totalorder %s180, %s182
      %p189 = scmp.eq.s32.totalorder %s25, 1
      %p190 = por %p188, %p189
      %p191 = scmp.ne.s32.totalorder %s182, %s183
      %p192 = scmp.eq.s32.totalorder %s25, 0
      %p193 = por %p191, %p192
      %p194 = scmp.ne.s32.totalorder %s182, %s183
      %p195 = scmp.eq.s32.totalorder %s26, 1
      %p196 = por %p194, %p195
      %p198 = scmp.ne.s32.totalorder %s183, %s197
      %p199 = scmp.eq.s32.totalorder %s26, 0
      %p200 = por %p198, %p199
      %s202 = sadd.s32 %s201, 1
      %p205 = scmp.eq.s32.totalorder %s20, 1
      %p206 = scmp.ne.s32.totalorder %s201, %s203
      %p207 = scmp.eq.s32.totalorder %s20, 0
      %p208 = por %p206, %p207
      %p209 = scmp.ne.s32.totalorder %s201, %s203
      %p210 = scmp.eq.s32.totalorder %s25, 1
      %p211 = por %p209, %p210
      %p212 = scmp.ne.s32.totalorder %s203, %s204
      %p213 = scmp.eq.s32.totalorder %s25, 0
      %p214 = por %p212, %p213
      %p215 = scmp.ne.s32.totalorder %s203, %s204
      %p216 = scmp.eq.s32.totalorder %s26, 1
      %p217 = por %p215, %p216
      %p219 = scmp.ne.s32.totalorder %s204, %s218
      %p220 = scmp.eq.s32.totalorder %s26, 0
      %p221 = por %p219, %p220
      %s223 = sadd.s32 %s222, 1
      %p226 = scmp.eq.s32.totalorder %s20, 1
      %p227 = scmp.ne.s32.totalorder %s222, %s224
      %p228 = scmp.eq.s32.totalorder %s20, 0
      %p229 = por %p227, %p228
      %p230 = scmp.ne.s32.totalorder %s222, %s224
      %p231 = scmp.eq.s32.totalorder %s25, 1
      %p232 = por %p230, %p231
      %p233 = scmp.ne.s32.totalorder %s224, %s225
      %p234 = scmp.eq.s32.totalorder %s25, 0
      %p235 = por %p233, %p234
      %p236 = scmp.ne.s32.totalorder %s224, %s225
      %p237 = scmp.eq.s32.totalorder %s26, 1
      %p238 = por %p236, %p237
      %p240 = scmp.ne.s32.totalorder %s225, %s239
      %p241 = scmp.eq.s32.totalorder %s26, 0
      %p242 = por %p240, %p241
      %s244 = sadd.s32 %s243, 1
      %p247 = scmp.eq.s32.totalorder %s20, 1
      %p248 = scmp.ne.s32.totalorder %s243, %s245
      %p249 = scmp.eq.s32.totalorder %s20, 0
      %p250 = por %p248, %p249
      %p251 = scmp.ne.s32.totalorder %s243, %s245
      %p252 = scmp.eq.s32.totalorder %s25, 1
      %p253 = por %p251, %p252
      %p254 = scmp.ne.s32.totalorder %s245, %s246
      %p255 = scmp.eq.s32.totalorder %s25, 0
      %p256 = por %p254, %p255
      %p257 = scmp.ne.s32.totalorder %s245, %s246
      %p258 = scmp.eq.s32.totalorder %s26, 1
      %p259 = por %p257, %p258
      %p261 = scmp.ne.s32.totalorder %s246, %s260
      %p262 = scmp.eq.s32.totalorder %s26, 0
      %p263 = por %p261, %p262
      %s264 = ssub.s32 %s20, %s27
      %p265 = scmp.eq.s32.totalorder %s264, 0
      %s267 = sadd.s32 %s266, 1
      %s268 = scalar_select %p265, %s266, %s267
      %p271 = pneg %p265
      %p272 = scmp.eq.s32.totalorder %s20, 1
      %p273 = por %p271, %p272
      %p274 = scmp.ne.s32.totalorder %s266, %s269
      %p275 = scmp.eq.s32.totalorder %s20, 0
      %p276 = por %p274, %p275
      %p277 = scmp.ne.s32.totalorder %s266, %s269
      %p278 = scmp.eq.s32.totalorder %s25, 1
      %p279 = por %p277, %p278
      %p280 = scmp.ne.s32.totalorder %s269, %s270
      %p281 = scmp.eq.s32.totalorder %s25, 0
      %p282 = por %p280, %p281
      %p283 = scmp.ne.s32.totalorder %s269, %s270
      %p284 = scmp.eq.s32.totalorder %s26, 1
      %p285 = por %p283, %p284
      %p287 = scmp.ne.s32.totalorder %s270, %s286
      %p288 = scmp.eq.s32.totalorder %s26, 0
      %p289 = por %p287, %p288
      %p290 = scmp.le.s32.totalorder 1, %s20
      %p291 = scmp.lt.s32.totalorder %s20, 3
      %p292 = pnand %p290, %p291
      %p293 = pneg %p292
      // Predicated region
      $region9: #{tpu_custom_call.1} parent=5 // pred_check
        _
      $region10: #{tpu_custom_call.1} parent=5 // pred_check_branch
        %295 = sbr.rel (%p292) target = $region12
      $region11: #{tpu_custom_call.1} parent=5 // pred_region
        %s296 = ssub.s32 %s20, 1
        // Predicated region
        $region13: #{tpu_custom_call.1} parent=11 // pred_check
          %p297 = pneg %p67
        $region14: #{tpu_custom_call.1} parent=11 // pred_check_branch
          %299 = sbr.rel (%p297) target = $region16
        $region15: #{tpu_custom_call.1} parent=11 // pred_region
          _
        $region16: #{tpu_custom_call.1} parent=11 // pred_fallthru
          _
        // Predicated region
        $region17: #{tpu_custom_call.1} parent=11 // pred_check
          %p300 = pneg %p88
        $region18: #{tpu_custom_call.1} parent=11 // pred_check_branch
          %302 = sbr.rel (%p300) target = $region20
        $region19: #{tpu_custom_call.1} parent=11 // pred_region
          _
        $region20: #{tpu_custom_call.1} parent=11 // pred_fallthru
          _
        // Predicated region
        $region21: #{tpu_custom_call.1} parent=11 // pred_check
          %p303 = pneg %p109
        $region22: #{tpu_custom_call.1} parent=11 // pred_check_branch
          %305 = sbr.rel (%p303) target = $region24
        $region23: #{tpu_custom_call.1} parent=11 // pred_region
          _
        $region24: #{tpu_custom_call.1} parent=11 // pred_fallthru
          _
        // Predicated region
        $region25: #{tpu_custom_call.1} parent=11 // pred_check
          %p306 = pneg %p130
        $region26: #{tpu_custom_call.1} parent=11 // pred_check_branch
          %308 = sbr.rel (%p306) target = $region28
        $region27: #{tpu_custom_call.1} parent=11 // pred_region
          _
        $region28: #{tpu_custom_call.1} parent=11 // pred_fallthru
          _
        // Predicated region
        $region29: #{tpu_custom_call.1} parent=11 // pred_check
          %p309 = pneg %p151
        $region30: #{tpu_custom_call.1} parent=11 // pred_check_branch
          %311 = sbr.rel (%p309) target = $region32
        $region31: #{tpu_custom_call.1} parent=11 // pred_region
          _
        $region32: #{tpu_custom_call.1} parent=11 // pred_fallthru
          _
        // Predicated region
        $region33: #{tpu_custom_call.1} parent=11 // pred_check
          %p312 = pneg %p172
        $region34: #{tpu_custom_call.1} parent=11 // pred_check_branch
          %314 = sbr.rel (%p312) target = $region36
        $region35: #{tpu_custom_call.1} parent=11 // pred_region
          _
        $region36: #{tpu_custom_call.1} parent=11 // pred_fallthru
          _
        // Predicated region
        $region37: #{tpu_custom_call.1} parent=11 // pred_check
          %p315 = pneg %p193
        $region38: #{tpu_custom_call.1} parent=11 // pred_check_branch
          %317 = sbr.rel (%p315) target = $region40
        $region39: #{tpu_custom_call.1} parent=11 // pred_region
          _
        $region40: #{tpu_custom_call.1} parent=11 // pred_fallthru
          _
        // Predicated region
        $region41: #{tpu_custom_call.1} parent=11 // pred_check
          %p318 = pneg %p214
        $region42: #{tpu_custom_call.1} parent=11 // pred_check_branch
          %320 = sbr.rel (%p318) target = $region44
        $region43: #{tpu_custom_call.1} parent=11 // pred_region
          _
        $region44: #{tpu_custom_call.1} parent=11 // pred_fallthru
          _
        // Predicated region
        $region45: #{tpu_custom_call.1} parent=11 // pred_check
          %p321 = pneg %p235
        $region46: #{tpu_custom_call.1} parent=11 // pred_check_branch
          %323 = sbr.rel (%p321) target = $region48
        $region47: #{tpu_custom_call.1} parent=11 // pred_region
          _
        $region48: #{tpu_custom_call.1} parent=11 // pred_fallthru
          _
        // Predicated region
        $region49: #{tpu_custom_call.1} parent=11 // pred_check
          %p324 = pneg %p256
        $region50: #{tpu_custom_call.1} parent=11 // pred_check_branch
          %326 = sbr.rel (%p324) target = $region52
        $region51: #{tpu_custom_call.1} parent=11 // pred_region
          _
        $region52: #{tpu_custom_call.1} parent=11 // pred_fallthru
          _
      $region12: #{tpu_custom_call.1} parent=5 // pred_fallthru
        _
      %p327 = scmp.lt.s32.totalorder %s20, 2
      // Predicated region
      $region53: #{tpu_custom_call.1} parent=5 // pred_check
        %p328 = pneg %p327
      $region54: #{tpu_custom_call.1} parent=5 // pred_check_branch
        %330 = sbr.rel (%p328) target = $region56
      $region55: #{tpu_custom_call.1} parent=5 // pred_region
        // Predicated region
        $region57: #{tpu_custom_call.1} parent=55 // pred_check
          %p331 = pneg %p40
        $region58: #{tpu_custom_call.1} parent=55 // pred_check_branch
          %333 = sbr.rel (%p331) target = $region60
        $region59: #{tpu_custom_call.1} parent=55 // pred_region
          %p334 = scmp.lt.s32.totalorder %s20, 1
          %s335 = scalar_select %p334, %s20, 1
          %s336 = smul.addr %s335, 4
          %s337 = scalar_lea.vmem %s0, %s336
        $region60: #{tpu_custom_call.1} parent=55 // pred_fallthru
          _
      $region56: #{tpu_custom_call.1} parent=5 // pred_fallthru
        _
      %p338 = scmp.le.s32.totalorder 1, %s20
      %p339 = scmp.lt.s32.totalorder %s20, 3
      %p340 = pnand %p338, %p339
      %p341 = pneg %p340
      // Predicated region
      $region61: #{tpu_custom_call.1} parent=5 // pred_check
        _
      $region62: #{tpu_custom_call.1} parent=5 // pred_check_branch
        %343 = sbr.rel (%p340) target = $region64
      $region63: #{tpu_custom_call.1} parent=5 // pred_region
        %s344 = ssub.s32 %s20, 1
        %p345 = scmp.lt.s32.totalorder %s25, 1
        %s346 = scalar_select %p345, %s25, 1
        %s347 = smul.addr %s346, 4
        %s348 = scalar_lea.vmem %s0, %s347
        %p349 = pneg %p46
        %p350 = pneg %p43
        %p351 = pneg %p67
        %p352 = pneg %p64
        %p353 = pneg %p88
        %p354 = pneg %p85
        %p355 = pneg %p109
        %p356 = pneg %p106
        %p357 = pneg %p130
        %p358 = pneg %p127
        %p359 = pneg %p151
        %p360 = pneg %p148
        %p361 = pneg %p172
        %p362 = pneg %p169
        %p363 = pneg %p193
        %p364 = pneg %p190
        %p365 = pneg %p214
        %p366 = pneg %p211
        %p367 = pneg %p235
        %p368 = pneg %p232
        %p369 = pneg %p256
        %p370 = pneg %p253
        %p371 = pneg %p282
        %p372 = pneg %p279
        %s373 = sand.u32 %s269, 1
        %s374 = scalar_lea.sflag [#allocation3], %s373
        %s375 = sand.u32 %s269, 1
        %s376 = scalar_lea.vmem [#allocation2], %s375
        %p377 = scmp.lt.s32.totalorder %s25, 1
        %s378 = scalar_select %p377, %s25, 1
        %s379 = smul.addr %s378, 4
        %s380 = scalar_lea.vmem %s0, %s379
        %v381 = vld [vmem:[%s380] sm:$0xf]
        %v382 = vld [vmem:[%s1] sm:$0xff]
        %v383 = vld [vmem:[%s1 + $0x8] sm:$0xff]
        %v384 = vld [vmem:[%s1 + $0x10] sm:$0xff]
        %v385 = vld [vmem:[%s1 + $0x18] sm:$0xff]
        %v386 = vld [vmem:[%s1 + $0x20] sm:$0xff]
        %v387 = vld [vmem:[%s1 + $0x28] sm:$0xff]
        %v388 = vld [vmem:[%s1 + $0x30] sm:$0xff]
        %v389 = vld [vmem:[%s1 + $0x38] sm:$0xff]
        %v391 = vrot.slane %v381, 4
        %392 = vrot.lane.b32.xlu0 %v391, 127
        %v393 = vpop.permute.xlu0 %392
        %395 = vrot.lane.b32.xlu0 %v381, 126
        %v396 = vpop.permute.xlu0 %395
        %vm397 = vcmask 1043456
        %v398 = vsel %vm397, %v381, %v393
        %v399 = vld [vmem:[%s2] sm:$0xff]
        %v400 = vld [vmem:[%s2 + $0x8] sm:$0xff]
        %v401 = vld [vmem:[%s2 + $0x10] sm:$0xff]
        %v402 = vld [vmem:[%s2 + $0x18] sm:$0xff]
        %v403 = vld [vmem:[%s2 + $0x20] sm:$0xff]
        %v404 = vld [vmem:[%s2 + $0x28] sm:$0xff]
        %v405 = vld [vmem:[%s2 + $0x30] sm:$0xff]
        %v406 = vld [vmem:[%s2 + $0x38] sm:$0xff]
        %408 = vset.pattern.permute.xlu0 0
        %409 = vperm.xlu0 %408, %v399
        %v410 = vpop.permute.xlu0 %409
        %413 = vset.pattern.permute.xlu0 0
        %414 = vperm.xlu0 %413, %v400
        %v415 = vpop.permute.xlu0 %414
        %418 = vset.pattern.permute.xlu0 0
        %419 = vperm.xlu0 %418, %v401
        %v420 = vpop.permute.xlu0 %419
        %423 = vset.pattern.permute.xlu0 0
        %424 = vperm.xlu0 %423, %v402
        %v425 = vpop.permute.xlu0 %424
        %428 = vset.pattern.permute.xlu0 0
        %429 = vperm.xlu0 %428, %v403
        %v430 = vpop.permute.xlu0 %429
        %433 = vset.pattern.permute.xlu0 0
        %434 = vperm.xlu0 %433, %v404
        %v435 = vpop.permute.xlu0 %434
        %438 = vset.pattern.permute.xlu0 0
        %439 = vperm.xlu0 %438, %v405
        %v440 = vpop.permute.xlu0 %439
        %443 = vset.pattern.permute.xlu0 0
        %444 = vperm.xlu0 %443, %v406
        %v445 = vpop.permute.xlu0 %444
        %vm447 = vcmask 97280
        %v449 = vsel %vm447, %v382, 0
        %v452 = vsel %vm447, %v383, 0
        %v455 = vsel %vm447, %v384, 0
        %v458 = vsel %vm447, %v385, 0
        %v461 = vsel %vm447, %v386, 0
        %v464 = vsel %vm447, %v387, 0
        %v467 = vsel %vm447, %v388, 0
        %v470 = vsel %vm447, %v389, 0
        %v472 = vsel %vm397, %v396, 0
        %474 = vmatprep.subr.mxu0 0.0
        %475 = vmatpush1.msra.mxu0 %v398
        %476 = vmatprep.subr.mxu0 0.0
        %477 = vmatpush1.msra.mxu0 %v472
        %478 = vmatprep.subr.mxu0 0.0
        %479 = vmatpush1.msra.mxu0 0.0
        %480 = vmatprep.subr.mxu0 0.0
        %481 = vmatpush1.msra.mxu0 0.0
        %482 = vmatprep.subr.mxu0 0.0
        %483 = vmatpush1.msra.mxu0 0.0
        %484 = vmatprep.subr.mxu0 0.0
        %485 = vmatpush1.msra.mxu0 0.0
        %486 = vmatprep.subr.mxu0 0.0
        %487 = vmatpush1.msra.mxu0 0.0
        %488 = vmatprep.subr.mxu0 0.0
        %489 = vmatpush1.msra.mxu0 0.0
        %490 = vmatprep.subr.mxu0 0.0
        %491 = vmatpush1.msra.mxu0 0.0
        %492 = vmatprep.subr.mxu0 0.0
        %493 = vmatpush1.msra.mxu0 0.0
        %494 = vmatprep.subr.mxu0 0.0
        %495 = vmatpush1.msra.mxu0 0.0
        %496 = vmatprep.subr.mxu0 0.0
        %497 = vmatpush1.msra.mxu0 0.0
        %498 = vmatprep.subr.mxu0 0.0
        %499 = vmatpush1.msra.mxu0 0.0
        %500 = vmatprep.subr.mxu0 0.0
        %501 = vmatpush1.msra.mxu0 0.0
        %502 = vmatprep.subr.mxu0 0.0
        %503 = vmatpush1.msra.mxu0 0.0
        %504 = vmatprep.subr.mxu0 0.0
        %505 = vmatpush1.msra.mxu0 0.0
        %506 = vmatprep.subr.mxu0 0.0
        %507 = vmatpush1.msra.mxu0 0.0
        %508 = vmatprep.subr.mxu0 0.0
        %509 = vmatpush1.msra.mxu0 0.0
        %510 = vmatprep.subr.mxu0 0.0
        %511 = vmatpush1.msra.mxu0 0.0
        %512 = vmatprep.subr.mxu0 0.0
        %513 = vmatpush1.msra.mxu0 0.0
        %514 = vmatprep.subr.mxu0 0.0
        %515 = vmatpush1.msra.mxu0 0.0
        %516 = vmatprep.subr.mxu0 0.0
        %517 = vmatpush1.msra.mxu0 0.0
        %518 = vmatprep.subr.mxu0 0.0
        %519 = vmatpush1.msra.mxu0 0.0
        %520 = vmatprep.subr.mxu0 0.0
        %521 = vmatpush1.msra.mxu0 0.0
        %522 = vmatprep.subr.mxu0 0.0
        %523 = vmatpush1.msra.mxu0 0.0
        %524 = vmatprep.subr.mxu0 0.0
        %525 = vmatpush1.msra.mxu0 0.0
        %526 = vmatprep.subr.mxu0 0.0
        %527 = vmatpush1.msra.mxu0 0.0
        %528 = vmatprep.subr.mxu0 0.0
        %529 = vmatpush1.msra.mxu0 0.0
        %530 = vmatprep.subr.mxu0 0.0
        %531 = vmatpush1.msra.mxu0 0.0
        %532 = vmatprep.subr.mxu0 0.0
        %533 = vmatpush1.msra.mxu0 0.0
        %534 = vmatprep.subr.mxu0 0.0
        %535 = vmatpush1.msra.mxu0 0.0
        %536 = vmatprep.subr.mxu0 0.0
        %537 = vmatpush1.msra.mxu0 0.0
        %538 = vmatprep.mubr.f32.mxu0 0.0
        %539 = vmatmul.mubr.f32.gmra.mrb[0].mxu0 %v449
        %v540 = vpop.f32.mrb[0].mxu0
        %v541 = vadd.f32 %v410, %v540
        %v542 = vpop.f32.mrb[0].mxu0
        %543 = vmatprep.mubr.f32.mxu0 0.0
        %544 = vmatmul.mubr.f32.gmra.mrb[0].mxu0 %v452
        %v545 = vpop.f32.mrb[0].mxu0
        %v546 = vadd.f32 %v415, %v545
        %v547 = vpop.f32.mrb[0].mxu0
        %548 = vmatprep.mubr.f32.mxu0 0.0
        %549 = vmatmul.mubr.f32.gmra.mrb[0].mxu0 %v455
        %v550 = vpop.f32.mrb[0].mxu0
        %v551 = vadd.f32 %v420, %v550
        %v552 = vpop.f32.mrb[0].mxu0
        %553 = vmatprep.mubr.f32.mxu0 0.0
        %554 = vmatmul.mubr.f32.gmra.mrb[0].mxu0 %v458
        %v555 = vpop.f32.mrb[0].mxu0
        %v556 = vadd.f32 %v425, %v555
        %v557 = vpop.f32.mrb[0].mxu0
        %558 = vmatprep.mubr.f32.mxu0 0.0
        %559 = vmatmul.mubr.f32.gmra.mrb[0].mxu0 %v461
        %v560 = vpop.f32.mrb[0].mxu0
        %v561 = vadd.f32 %v430, %v560
        %v562 = vpop.f32.mrb[0].mxu0
        %563 = vmatprep.mubr.f32.mxu0 0.0
        %564 = vmatmul.mubr.f32.gmra.mrb[0].mxu0 %v464
        %v565 = vpop.f32.mrb[0].mxu0
        %v566 = vadd.f32 %v435, %v565
        %v567 = vpop.f32.mrb[0].mxu0
        %568 = vmatprep.mubr.f32.mxu0 0.0
        %569 = vmatmul.mubr.f32.gmra.mrb[0].mxu0 %v467
        %v570 = vpop.f32.mrb[0].mxu0
        %v571 = vadd.f32 %v440, %v570
        %v572 = vpop.f32.mrb[0].mxu0
        %573 = vmatprep.mubr.f32.mxu0 0.0
        %574 = vmatmul.mubr.f32.gmra.mrb[0].mxu0 %v470
        %v575 = vpop.f32.mrb[0].mxu0
        %v576 = vadd.f32 %v445, %v575
        %v577 = vpop.f32.mrb[0].mxu0
        %578 = vdwg.mxu0
        %v579 = vmax.f32 %v541, 0.0
        %v580 = vmax.f32 %v546, 0.0
        %v581 = vmax.f32 %v551, 0.0
        %v582 = vmax.f32 %v556, 0.0
        %v583 = vmax.f32 %v561, 0.0
        %v584 = vmax.f32 %v566, 0.0
        %v585 = vmax.f32 %v571, 0.0
        %v586 = vmax.f32 %v576, 0.0
        %v587 = vld [vmem:[%s7] sm:$0xff]
        %v588 = vld [vmem:[%s7 + $0x8] sm:$0xff]
        %v589 = vld [vmem:[%s7 + $0x10] sm:$0xff]
        %v590 = vld [vmem:[%s7 + $0x18] sm:$0xff]
        %v591 = vld [vmem:[%s7 + $0x20] sm:$0xff]
        %v592 = vld [vmem:[%s7 + $0x28] sm:$0xff]
        %v593 = vld [vmem:[%s7 + $0x30] sm:$0xff]
        %v594 = vld [vmem:[%s7 + $0x38] sm:$0xff]
        %vm595 = vcmask 523264
        %v597 = vsel %vm595, %v579, 0
        %v600 = vsel %vm595, %v580, 0
        %v603 = vsel %vm595, %v581, 0
        %v606 = vsel %vm595, %v582, 0
        %v609 = vsel %vm595, %v583, 0
        %v612 = vsel %vm595, %v584, 0
        %v615 = vsel %vm595, %v585, 0
        %v618 = vsel %vm595, %v586, 0
        %620 = vmatprep.subr.mxu0 0.0
        %621 = vmatpush1.msra.mxu0 %v587
        %622 = vmatprep.subr.mxu0 0.0
        %623 = vmatpush1.msra.mxu0 %v588
        %624 = vmatprep.subr.mxu0 0.0
        %625 = vmatpush1.msra.mxu0 %v589
        %626 = vmatprep.subr.mxu0 0.0
        %627 = vmatpush1.msra.mxu0 %v590
        %628 = vmatprep.subr.mxu0 0.0
        %629 = vmatpush1.msra.mxu0 %v591
        %630 = vmatprep.subr.mxu0 0.0
        %631 = vmatpush1.msra.mxu0 %v592
        %632 = vmatprep.subr.mxu0 0.0
        %633 = vmatpush1.msra.mxu0 %v593
        %634 = vmatprep.subr.mxu0 0.0
        %635 = vmatpush1.msra.mxu0 %v594
        %636 = vmatprep.subr.mxu0 0.0
        %637 = vmatpush1.msra.mxu0 0.0
        %638 = vmatprep.subr.mxu0 0.0
        %639 = vmatpush1.msra.mxu0 0.0
        %640 = vmatprep.subr.mxu0 0.0
        %641 = vmatpush1.msra.mxu0 0.0
        %642 = vmatprep.subr.mxu0 0.0
        %643 = vmatpush1.msra.mxu0 0.0
        %644 = vmatprep.subr.mxu0 0.0
        %645 = vmatpush1.msra.mxu0 0.0
        %646 = vmatprep.subr.mxu0 0.0
        %647 = vmatpush1.msra.mxu0 0.0
        %648 = vmatprep.subr.mxu0 0.0
        %649 = vmatpush1.msra.mxu0 0.0
        %650 = vmatprep.subr.mxu0 0.0
        %651 = vmatpush1.msra.mxu0 0.0
        %652 = vmatprep.subr.mxu0 0.0
        %653 = vmatpush1.msra.mxu0 0.0
        %654 = vmatprep.subr.mxu0 0.0
        %655 = vmatpush1.msra.mxu0 0.0
        %656 = vmatprep.subr.mxu0 0.0
        %657 = vmatpush1.msra.mxu0 0.0
        %658 = vmatprep.subr.mxu0 0.0
        %659 = vmatpush1.msra.mxu0 0.0
        %660 = vmatprep.subr.mxu0 0.0
        %661 = vmatpush1.msra.mxu0 0.0
        %662 = vmatprep.subr.mxu0 0.0
        %663 = vmatpush1.msra.mxu0 0.0
        %664 = vmatprep.subr.mxu0 0.0
        %665 = vmatpush1.msra.mxu0 0.0
        %666 = vmatprep.subr.mxu0 0.0
        %667 = vmatpush1.msra.mxu0 0.0
        %668 = vmatprep.subr.mxu0 0.0
        %669 = vmatpush1.msra.mxu0 0.0
        %670 = vmatprep.subr.mxu0 0.0
        %671 = vmatpush1.msra.mxu0 0.0
        %672 = vmatprep.subr.mxu0 0.0
        %673 = vmatpush1.msra.mxu0 0.0
        %674 = vmatprep.subr.mxu0 0.0
        %675 = vmatpush1.msra.mxu0 0.0
        %676 = vmatprep.subr.mxu0 0.0
        %677 = vmatpush1.msra.mxu0 0.0
        %678 = vmatprep.subr.mxu0 0.0
        %679 = vmatpush1.msra.mxu0 0.0
        %680 = vmatprep.subr.mxu0 0.0
        %681 = vmatpush1.msra.mxu0 0.0
        %682 = vmatprep.subr.mxu0 0.0
        %683 = vmatpush1.msra.mxu0 0.0
        %684 = vmatprep.mubr.f32.mxu0 0.0
        %685 = vmatmul.mubr.f32.gmra.mrb[0].mxu0 %v597
        %v686 = vpop.f32.mrb[0].mxu0
        %v687 = vadd.f32 0.0, %v686
        %v688 = vpop.f32.mrb[0].mxu0
        %689 = vmatprep.mubr.f32.mxu0 0.0
        %690 = vmatmul.mubr.f32.gmra.mrb[0].mxu0 %v600
        %v691 = vpop.f32.mrb[0].mxu0
        %v692 = vadd.f32 0.0, %v691
        %v693 = vpop.f32.mrb[0].mxu0
        %694 = vmatprep.mubr.f32.mxu0 0.0
        %695 = vmatmul.mubr.f32.gmra.mrb[0].mxu0 %v603
        %v696 = vpop.f32.mrb[0].mxu0
        %v697 = vadd.f32 0.0, %v696
        %v698 = vpop.f32.mrb[0].mxu0
        %699 = vmatprep.mubr.f32.mxu0 0.0
        %700 = vmatmul.mubr.f32.gmra.mrb[0].mxu0 %v606
        %v701 = vpop.f32.mrb[0].mxu0
        %v702 = vadd.f32 0.0, %v701
        %v703 = vpop.f32.mrb[0].mxu0
        %704 = vmatprep.mubr.f32.mxu0 0.0
        %705 = vmatmul.mubr.f32.gmra.mrb[0].mxu0 %v609
        %v706 = vpop.f32.mrb[0].mxu0
        %v707 = vadd.f32 0.0, %v706
        %v708 = vpop.f32.mrb[0].mxu0
        %709 = vmatprep.mubr.f32.mxu0 0.0
        %710 = vmatmul.mubr.f32.gmra.mrb[0].mxu0 %v612
        %v711 = vpop.f32.mrb[0].mxu0
        %v712 = vadd.f32 0.0, %v711
        %v713 = vpop.f32.mrb[0].mxu0
        %714 = vmatprep.mubr.f32.mxu0 0.0
        %715 = vmatmul.mubr.f32.gmra.mrb[0].mxu0 %v615
        %v716 = vpop.f32.mrb[0].mxu0
        %v717 = vadd.f32 0.0, %v716
        %v718 = vpop.f32.mrb[0].mxu0
        %719 = vmatprep.mubr.f32.mxu0 0.0
        %720 = vmatmul.mubr.f32.gmra.mrb[0].mxu0 %v618
        %v721 = vpop.f32.mrb[0].mxu0
        %v722 = vadd.f32 0.0, %v721
        %v723 = vpop.f32.mrb[0].mxu0
        %724 = vdwg.mxu0
        %v725 = vld [vmem:[%s8] sm:$0xff]
        %v726 = vld [vmem:[%s8 + $0x8] sm:$0xff]
        %v727 = vld [vmem:[%s8 + $0x10] sm:$0xff]
        %v728 = vld [vmem:[%s8 + $0x18] sm:$0xff]
        %v729 = vld [vmem:[%s8 + $0x20] sm:$0xff]
        %v730 = vld [vmem:[%s8 + $0x28] sm:$0xff]
        %v731 = vld [vmem:[%s8 + $0x30] sm:$0xff]
        %v732 = vld [vmem:[%s8 + $0x38] sm:$0xff]
        %733 = vmatprep.subr.mxu0 0.0
        %734 = vmatpush1.msra.mxu0 %v725
        %735 = vmatprep.subr.mxu0 0.0
        %736 = vmatpush1.msra.mxu0 %v726
        %737 = vmatprep.subr.mxu0 0.0
        %738 = vmatpush1.msra.mxu0 %v727
        %739 = vmatprep.subr.mxu0 0.0
        %740 = vmatpush1.msra.mxu0 %v728
        %741 = vmatprep.subr.mxu0 0.0
        %742 = vmatpush1.msra.mxu0 %v729
        %743 = vmatprep.subr.mxu0 0.0
        %744 = vmatpush1.msra.mxu0 %v730
        %745 = vmatprep.subr.mxu0 0.0
        %746 = vmatpush1.msra.mxu0 %v731
        %747 = vmatprep.subr.mxu0 0.0
        %748 = vmatpush1.msra.mxu0 %v732
        %749 = vmatprep.subr.mxu0 0.0
        %750 = vmatpush1.msra.mxu0 0.0
        %751 = vmatprep.subr.mxu0 0.0
        %752 = vmatpush1.msra.mxu0 0.0
        %753 = vmatprep.subr.mxu0 0.0
        %754 = vmatpush1.msra.mxu0 0.0
        %755 = vmatprep.subr.mxu0 0.0
        %756 = vmatpush1.msra.mxu0 0.0
        %757 = vmatprep.subr.mxu0 0.0
        %758 = vmatpush1.msra.mxu0 0.0
        %759 = vmatprep.subr.mxu0 0.0
        %760 = vmatpush1.msra.mxu0 0.0
        %761 = vmatprep.subr.mxu0 0.0
        %762 = vmatpush1.msra.mxu0 0.0
        %763 = vmatprep.subr.mxu0 0.0
        %764 = vmatpush1.msra.mxu0 0.0
        %765 = vmatprep.subr.mxu0 0.0
        %766 = vmatpush1.msra.mxu0 0.0
        %767 = vmatprep.subr.mxu0 0.0
        %768 = vmatpush1.msra.mxu0 0.0
        %769 = vmatprep.subr.mxu0 0.0
        %770 = vmatpush1.msra.mxu0 0.0
        %771 = vmatprep.subr.mxu0 0.0
        %772 = vmatpush1.msra.mxu0 0.0
        %773 = vmatprep.subr.mxu0 0.0
        %774 = vmatpush1.msra.mxu0 0.0
        %775 = vmatprep.subr.mxu0 0.0
        %776 = vmatpush1.msra.mxu0 0.0
        %777 = vmatprep.subr.mxu0 0.0
        %778 = vmatpush1.msra.mxu0 0.0
        %779 = vmatprep.subr.mxu0 0.0
        %780 = vmatpush1.msra.mxu0 0.0
        %781 = vmatprep.subr.mxu0 0.0
        %782 = vmatpush1.msra.mxu0 0.0
        %783 = vmatprep.subr.mxu0 0.0
        %784 = vmatpush1.msra.mxu0 0.0
        %785 = vmatprep.subr.mxu0 0.0
        %786 = vmatpush1.msra.mxu0 0.0
        %787 = vmatprep.subr.mxu0 0.0
        %788 = vmatpush1.msra.mxu0 0.0
        %789 = vmatprep.subr.mxu0 0.0
        %790 = vmatpush1.msra.mxu0 0.0
        %791 = vmatprep.subr.mxu0 0.0
        %792 = vmatpush1.msra.mxu0 0.0
        %793 = vmatprep.subr.mxu0 0.0
        %794 = vmatpush1.msra.mxu0 0.0
        %795 = vmatprep.subr.mxu0 0.0
        %796 = vmatpush1.msra.mxu0 0.0
        %797 = vmatprep.mubr.f32.mxu0 0.0
        %798 = vmatmul.mubr.f32.gmra.mrb[0].mxu0 %v597
        %v799 = vpop.f32.mrb[0].mxu0
        %v800 = vadd.f32 0.0, %v799
        %v801 = vpop.f32.mrb[0].mxu0
        %802 = vmatprep.mubr.f32.mxu0 0.0
        %803 = vmatmul.mubr.f32.gmra.mrb[0].mxu0 %v600
        %v804 = vpop.f32.mrb[0].mxu0
        %v805 = vadd.f32 0.0, %v804
        %v806 = vpop.f32.mrb[0].mxu0
        %807 = vmatprep.mubr.f32.mxu0 0.0
        %808 = vmatmul.mubr.f32.gmra.mrb[0].mxu0 %v603
        %v809 = vpop.f32.mrb[0].mxu0
        %v810 = vadd.f32 0.0, %v809
        %v811 = vpop.f32.mrb[0].mxu0
        %812 = vmatprep.mubr.f32.mxu0 0.0
        %813 = vmatmul.mubr.f32.gmra.mrb[0].mxu0 %v606
        %v814 = vpop.f32.mrb[0].mxu0
        %v815 = vadd.f32 0.0, %v814
        %v816 = vpop.f32.mrb[0].mxu0
        %817 = vmatprep.mubr.f32.mxu0 0.0
        %818 = vmatmul.mubr.f32.gmra.mrb[0].mxu0 %v609
        %v819 = vpop.f32.mrb[0].mxu0
        %v820 = vadd.f32 0.0, %v819
        %v821 = vpop.f32.mrb[0].mxu0
        %822 = vmatprep.mubr.f32.mxu0 0.0
        %823 = vmatmul.mubr.f32.gmra.mrb[0].mxu0 %v612
        %v824 = vpop.f32.mrb[0].mxu0
        %v825 = vadd.f32 0.0, %v824
        %v826 = vpop.f32.mrb[0].mxu0
        %827 = vmatprep.mubr.f32.mxu0 0.0
        %828 = vmatmul.mubr.f32.gmra.mrb[0].mxu0 %v615
        %v829 = vpop.f32.mrb[0].mxu0
        %v830 = vadd.f32 0.0, %v829
        %v831 = vpop.f32.mrb[0].mxu0
        %832 = vmatprep.mubr.f32.mxu0 0.0
        %833 = vmatmul.mubr.f32.gmra.mrb[0].mxu0 %v618
        %v834 = vpop.f32.mrb[0].mxu0
        %v835 = vadd.f32 0.0, %v834
        %v836 = vpop.f32.mrb[0].mxu0
        %837 = vdwg.mxu0
        %v838 = vmax.f32 %v687, %v800
        %v839 = vmax.f32 %v692, %v805
        %v840 = vmax.f32 %v697, %v810
        %v841 = vmax.f32 %v702, %v815
        %v842 = vmax.f32 %v707, %v820
        %v843 = vmax.f32 %v712, %v825
        %v844 = vmax.f32 %v717, %v830
        %v845 = vmax.f32 %v722, %v835
        %v846 = vld [vmem:[%s3] sm:$0xff]
        %v847 = vld [vmem:[%s3 + $0x8] sm:$0xff]
        %v848 = vld [vmem:[%s3 + $0x10] sm:$0xff]
        %v849 = vld [vmem:[%s3 + $0x18] sm:$0xff]
        %v850 = vld [vmem:[%s3 + $0x20] sm:$0xff]
        %v851 = vld [vmem:[%s3 + $0x28] sm:$0xff]
        %v852 = vld [vmem:[%s3 + $0x30] sm:$0xff]
        %v853 = vld [vmem:[%s3 + $0x38] sm:$0xff]
        %v854 = vld [vmem:[%s4] sm:$0xff]
        %v855 = vld [vmem:[%s4 + $0x8] sm:$0xff]
        %v856 = vld [vmem:[%s4 + $0x10] sm:$0xff]
        %v857 = vld [vmem:[%s4 + $0x18] sm:$0xff]
        %v858 = vld [vmem:[%s4 + $0x20] sm:$0xff]
        %v859 = vld [vmem:[%s4 + $0x28] sm:$0xff]
        %v860 = vld [vmem:[%s4 + $0x30] sm:$0xff]
        %v861 = vld [vmem:[%s4 + $0x38] sm:$0xff]
        %863 = vset.pattern.permute.xlu0 0
        %864 = vperm.xlu0 %863, %v846
        %v865 = vpop.permute.xlu0 %864
        %868 = vset.pattern.permute.xlu0 0
        %869 = vperm.xlu0 %868, %v847
        %v870 = vpop.permute.xlu0 %869
        %873 = vset.pattern.permute.xlu0 0
        %874 = vperm.xlu0 %873, %v848
        %v875 = vpop.permute.xlu0 %874
        %878 = vset.pattern.permute.xlu0 0
        %879 = vperm.xlu0 %878, %v849
        %v880 = vpop.permute.xlu0 %879
        %883 = vset.pattern.permute.xlu0 0
        %884 = vperm.xlu0 %883, %v850
        %v885 = vpop.permute.xlu0 %884
        %888 = vset.pattern.permute.xlu0 0
        %889 = vperm.xlu0 %888, %v851
        %v890 = vpop.permute.xlu0 %889
        %893 = vset.pattern.permute.xlu0 0
        %894 = vperm.xlu0 %893, %v852
        %v895 = vpop.permute.xlu0 %894
        %898 = vset.pattern.permute.xlu0 0
        %899 = vperm.xlu0 %898, %v853
        %v900 = vpop.permute.xlu0 %899
        %v902 = vmul.f32 %v865, %v838
        %v903 = vmul.f32 %v870, %v839
        %v904 = vmul.f32 %v875, %v840
        %v905 = vmul.f32 %v880, %v841
        %v906 = vmul.f32 %v885, %v842
        %v907 = vmul.f32 %v890, %v843
        %v908 = vmul.f32 %v895, %v844
        %v909 = vmul.f32 %v900, %v845
        %910 = vset.pattern.permute.xlu0 1
        %911 = vperm.xlu0 %910, %v846
        %v912 = vpop.permute.xlu0 %911
        %914 = vset.pattern.permute.xlu0 1
        %915 = vperm.xlu0 %914, %v847
        %v916 = vpop.permute.xlu0 %915
        %918 = vset.pattern.permute.xlu0 1
        %919 = vperm.xlu0 %918, %v848
        %v920 = vpop.permute.xlu0 %919
        %922 = vset.pattern.permute.xlu0 1
        %923 = vperm.xlu0 %922, %v849
        %v924 = vpop.permute.xlu0 %923
        %926 = vset.pattern.permute.xlu0 1
        %927 = vperm.xlu0 %926, %v850
        %v928 = vpop.permute.xlu0 %927
        %930 = vset.pattern.permute.xlu0 1
        %931 = vperm.xlu0 %930, %v851
        %v932 = vpop.permute.xlu0 %931
        %934 = vset.pattern.permute.xlu0 1
        %935 = vperm.xlu0 %934, %v852
        %v936 = vpop.permute.xlu0 %935
        %938 = vset.pattern.permute.xlu0 1
        %939 = vperm.xlu0 %938, %v853
        %v940 = vpop.permute.xlu0 %939
        %v942 = vmul.f32 %v912, %v838
        %v943 = vmul.f32 %v916, %v839
        %v944 = vmul.f32 %v920, %v840
        %v945 = vmul.f32 %v924, %v841
        %v946 = vmul.f32 %v928, %v842
        %v947 = vmul.f32 %v932, %v843
        %v948 = vmul.f32 %v936, %v844
        %v949 = vmul.f32 %v940, %v845
        %958 = vrot.lane.b32.xlu0 %v942, 127
        %v959 = vpop.permute.xlu0 %958
        %960 = vrot.lane.b32.xlu0 %v943, 127
        %v961 = vpop.permute.xlu0 %960
        %962 = vrot.lane.b32.xlu0 %v944, 127
        %v963 = vpop.permute.xlu0 %962
        %964 = vrot.lane.b32.xlu0 %v945, 127
        %v965 = vpop.permute.xlu0 %964
        %966 = vrot.lane.b32.xlu0 %v946, 127
        %v967 = vpop.permute.xlu0 %966
        %968 = vrot.lane.b32.xlu0 %v947, 127
        %v969 = vpop.permute.xlu0 %968
        %970 = vrot.lane.b32.xlu0 %v948, 127
        %v971 = vpop.permute.xlu0 %970
        %972 = vrot.lane.b32.xlu0 %v949, 127
        %v973 = vpop.permute.xlu0 %972
        %v982 = vadd.f32 %v902, %v959
        %v983 = vadd.f32 %v903, %v961
        %v984 = vadd.f32 %v904, %v963
        %v985 = vadd.f32 %v905, %v965
        %v986 = vadd.f32 %v906, %v967
        %v987 = vadd.f32 %v907, %v969
        %v988 = vadd.f32 %v908, %v971
        %v989 = vadd.f32 %v909, %v973
        %990 = vset.pattern.permute.xlu0 2
        %991 = vperm.xlu0 %990, %v846
        %v992 = vpop.permute.xlu0 %991
        %994 = vset.pattern.permute.xlu0 2
        %995 = vperm.xlu0 %994, %v847
        %v996 = vpop.permute.xlu0 %995
        %998 = vset.pattern.permute.xlu0 2
        %999 = vperm.xlu0 %998, %v848
        %v1000 = vpop.permute.xlu0 %999
        %1002 = vset.pattern.permute.xlu0 2
        %1003 = vperm.xlu0 %1002, %v849
        %v1004 = vpop.permute.xlu0 %1003
        %1006 = vset.pattern.permute.xlu0 2
        %1007 = vperm.xlu0 %1006, %v850
        %v1008 = vpop.permute.xlu0 %1007
        %1010 = vset.pattern.permute.xlu0 2
        %1011 = vperm.xlu0 %1010, %v851
        %v1012 = vpop.permute.xlu0 %1011
        %1014 = vset.pattern.permute.xlu0 2
        %1015 = vperm.xlu0 %1014, %v852
        %v1016 = vpop.permute.xlu0 %1015
        %1018 = vset.pattern.permute.xlu0 2
        %1019 = vperm.xlu0 %1018, %v853
        %v1020 = vpop.permute.xlu0 %1019
        %v1022 = vmul.f32 %v992, %v838
        %v1023 = vmul.f32 %v996, %v839
        %v1024 = vmul.f32 %v1000, %v840
        %v1025 = vmul.f32 %v1004, %v841
        %v1026 = vmul.f32 %v1008, %v842
        %v1027 = vmul.f32 %v1012, %v843
        %v1028 = vmul.f32 %v1016, %v844
        %v1029 = vmul.f32 %v1020, %v845
        %1038 = vrot.lane.b32.xlu0 %v1022, 126
        %v1039 = vpop.permute.xlu0 %1038
        %1040 = vrot.lane.b32.xlu0 %v1023, 126
        %v1041 = vpop.permute.xlu0 %1040
        %1042 = vrot.lane.b32.xlu0 %v1024, 126
        %v1043 = vpop.permute.xlu0 %1042
        %1044 = vrot.lane.b32.xlu0 %v1025, 126
        %v1045 = vpop.permute.xlu0 %1044
        %1046 = vrot.lane.b32.xlu0 %v1026, 126
        %v1047 = vpop.permute.xlu0 %1046
        %1048 = vrot.lane.b32.xlu0 %v1027, 126
        %v1049 = vpop.permute.xlu0 %1048
        %1050 = vrot.lane.b32.xlu0 %v1028, 126
        %v1051 = vpop.permute.xlu0 %1050
        %1052 = vrot.lane.b32.xlu0 %v1029, 126
        %v1053 = vpop.permute.xlu0 %1052
        %v1062 = vadd.f32 %v982, %v1039
        %v1063 = vadd.f32 %v983, %v1041
        %v1064 = vadd.f32 %v984, %v1043
        %v1065 = vadd.f32 %v985, %v1045
        %v1066 = vadd.f32 %v986, %v1047
        %v1067 = vadd.f32 %v987, %v1049
        %v1068 = vadd.f32 %v988, %v1051
        %v1069 = vadd.f32 %v989, %v1053
        %1070 = vset.pattern.permute.xlu0 3
        %1071 = vperm.xlu0 %1070, %v846
        %v1072 = vpop.permute.xlu0 %1071
        %1074 = vset.pattern.permute.xlu0 3
        %1075 = vperm.xlu0 %1074, %v847
        %v1076 = vpop.permute.xlu0 %1075
        %1078 = vset.pattern.permute.xlu0 3
        %1079 = vperm.xlu0 %1078, %v848
        %v1080 = vpop.permute.xlu0 %1079
        %1082 = vset.pattern.permute.xlu0 3
        %1083 = vperm.xlu0 %1082, %v849
        %v1084 = vpop.permute.xlu0 %1083
        %1086 = vset.pattern.permute.xlu0 3
        %1087 = vperm.xlu0 %1086, %v850
        %v1088 = vpop.permute.xlu0 %1087
        %1090 = vset.pattern.permute.xlu0 3
        %1091 = vperm.xlu0 %1090, %v851
        %v1092 = vpop.permute.xlu0 %1091
        %1094 = vset.pattern.permute.xlu0 3
        %1095 = vperm.xlu0 %1094, %v852
        %v1096 = vpop.permute.xlu0 %1095
        %1098 = vset.pattern.permute.xlu0 3
        %1099 = vperm.xlu0 %1098, %v853
        %v1100 = vpop.permute.xlu0 %1099
        %v1102 = vmul.f32 %v1072, %v838
        %v1103 = vmul.f32 %v1076, %v839
        %v1104 = vmul.f32 %v1080, %v840
        %v1105 = vmul.f32 %v1084, %v841
        %v1106 = vmul.f32 %v1088, %v842
        %v1107 = vmul.f32 %v1092, %v843
        %v1108 = vmul.f32 %v1096, %v844
        %v1109 = vmul.f32 %v1100, %v845
        %1118 = vrot.lane.b32.xlu0 %v1102, 125
        %v1119 = vpop.permute.xlu0 %1118
        %1120 = vrot.lane.b32.xlu0 %v1103, 125
        %v1121 = vpop.permute.xlu0 %1120
        %1122 = vrot.lane.b32.xlu0 %v1104, 125
        %v1123 = vpop.permute.xlu0 %1122
        %1124 = vrot.lane.b32.xlu0 %v1105, 125
        %v1125 = vpop.permute.xlu0 %1124
        %1126 = vrot.lane.b32.xlu0 %v1106, 125
        %v1127 = vpop.permute.xlu0 %1126
        %1128 = vrot.lane.b32.xlu0 %v1107, 125
        %v1129 = vpop.permute.xlu0 %1128
        %1130 = vrot.lane.b32.xlu0 %v1108, 125
        %v1131 = vpop.permute.xlu0 %1130
        %1132 = vrot.lane.b32.xlu0 %v1109, 125
        %v1133 = vpop.permute.xlu0 %1132
        %v1142 = vadd.f32 %v1062, %v1119
        %v1143 = vadd.f32 %v1063, %v1121
        %v1144 = vadd.f32 %v1064, %v1123
        %v1145 = vadd.f32 %v1065, %v1125
        %v1146 = vadd.f32 %v1066, %v1127
        %v1147 = vadd.f32 %v1067, %v1129
        %v1148 = vadd.f32 %v1068, %v1131
        %v1149 = vadd.f32 %v1069, %v1133
        %1150 = vset.pattern.permute.xlu0 4
        %1151 = vperm.xlu0 %1150, %v846
        %v1152 = vpop.permute.xlu0 %1151
        %1154 = vset.pattern.permute.xlu0 4
        %1155 = vperm.xlu0 %1154, %v847
        %v1156 = vpop.permute.xlu0 %1155
        %1158 = vset.pattern.permute.xlu0 4
        %1159 = vperm.xlu0 %1158, %v848
        %v1160 = vpop.permute.xlu0 %1159
        %1162 = vset.pattern.permute.xlu0 4
        %1163 = vperm.xlu0 %1162, %v849
        %v1164 = vpop.permute.xlu0 %1163
        %1166 = vset.pattern.permute.xlu0 4
        %1167 = vperm.xlu0 %1166, %v850
        %v1168 = vpop.permute.xlu0 %1167
        %1170 = vset.pattern.permute.xlu0 4
        %1171 = vperm.xlu0 %1170, %v851
        %v1172 = vpop.permute.xlu0 %1171
        %1174 = vset.pattern.permute.xlu0 4
        %1175 = vperm.xlu0 %1174, %v852
        %v1176 = vpop.permute.xlu0 %1175
        %1178 = vset.pattern.permute.xlu0 4
        %1179 = vperm.xlu0 %1178, %v853
        %v1180 = vpop.permute.xlu0 %1179
        %v1182 = vmul.f32 %v1152, %v838
        %v1183 = vmul.f32 %v1156, %v839
        %v1184 = vmul.f32 %v1160, %v840
        %v1185 = vmul.f32 %v1164, %v841
        %v1186 = vmul.f32 %v1168, %v842
        %v1187 = vmul.f32 %v1172, %v843
        %v1188 = vmul.f32 %v1176, %v844
        %v1189 = vmul.f32 %v1180, %v845
        %1198 = vrot.lane.b32.xlu0 %v1182, 124
        %v1199 = vpop.permute.xlu0 %1198
        %1200 = vrot.lane.b32.xlu0 %v1183, 124
        %v1201 = vpop.permute.xlu0 %1200
        %1202 = vrot.lane.b32.xlu0 %v1184, 124
        %v1203 = vpop.permute.xlu0 %1202
        %1204 = vrot.lane.b32.xlu0 %v1185, 124
        %v1205 = vpop.permute.xlu0 %1204
        %1206 = vrot.lane.b32.xlu0 %v1186, 124
        %v1207 = vpop.permute.xlu0 %1206
        %1208 = vrot.lane.b32.xlu0 %v1187, 124
        %v1209 = vpop.permute.xlu0 %1208
        %1210 = vrot.lane.b32.xlu0 %v1188, 124
        %v1211 = vpop.permute.xlu0 %1210
        %1212 = vrot.lane.b32.xlu0 %v1189, 124
        %v1213 = vpop.permute.xlu0 %1212
        %v1222 = vadd.f32 %v1142, %v1199
        %v1223 = vadd.f32 %v1143, %v1201
        %v1224 = vadd.f32 %v1144, %v1203
        %v1225 = vadd.f32 %v1145, %v1205
        %v1226 = vadd.f32 %v1146, %v1207
        %v1227 = vadd.f32 %v1147, %v1209
        %v1228 = vadd.f32 %v1148, %v1211
        %v1229 = vadd.f32 %v1149, %v1213
        %1231 = vset.pattern.permute.xlu0 0
        %1232 = vperm.xlu0 %1231, %v854
        %v1233 = vpop.permute.xlu0 %1232
        %1236 = vset.pattern.permute.xlu0 0
        %1237 = vperm.xlu0 %1236, %v855
        %v1238 = vpop.permute.xlu0 %1237
        %1241 = vset.pattern.permute.xlu0 0
        %1242 = vperm.xlu0 %1241, %v856
        %v1243 = vpop.permute.xlu0 %1242
        %1246 = vset.pattern.permute.xlu0 0
        %1247 = vperm.xlu0 %1246, %v857
        %v1248 = vpop.permute.xlu0 %1247
        %1251 = vset.pattern.permute.xlu0 0
        %1252 = vperm.xlu0 %1251, %v858
        %v1253 = vpop.permute.xlu0 %1252
        %1256 = vset.pattern.permute.xlu0 0
        %1257 = vperm.xlu0 %1256, %v859
        %v1258 = vpop.permute.xlu0 %1257
        %1261 = vset.pattern.permute.xlu0 0
        %1262 = vperm.xlu0 %1261, %v860
        %v1263 = vpop.permute.xlu0 %1262
        %1266 = vset.pattern.permute.xlu0 0
        %1267 = vperm.xlu0 %1266, %v861
        %v1268 = vpop.permute.xlu0 %1267
        %v1270 = vadd.f32 %v1222, %v1233
        %v1271 = vadd.f32 %v1223, %v1238
        %v1272 = vadd.f32 %v1224, %v1243
        %v1273 = vadd.f32 %v1225, %v1248
        %v1274 = vadd.f32 %v1226, %v1253
        %v1275 = vadd.f32 %v1227, %v1258
        %v1276 = vadd.f32 %v1228, %v1263
        %v1277 = vadd.f32 %v1229, %v1268
        %v1278 = vmax.f32 %v1270, 0.0
        %v1279 = vmax.f32 %v1271, 0.0
        %v1280 = vmax.f32 %v1272, 0.0
        %v1281 = vmax.f32 %v1273, 0.0
        %v1282 = vmax.f32 %v1274, 0.0
        %v1283 = vmax.f32 %v1275, 0.0
        %v1284 = vmax.f32 %v1276, 0.0
        %v1285 = vmax.f32 %v1277, 0.0
        %v1286 = vld [vmem:[%s9] sm:$0xff]
        %v1287 = vld [vmem:[%s9 + $0x8] sm:$0xff]
        %v1288 = vld [vmem:[%s9 + $0x10] sm:$0xff]
        %v1289 = vld [vmem:[%s9 + $0x18] sm:$0x3f]
        %vm1290 = vcmask 244736
        %v1292 = vsel %vm1290, %v1278, 0
        %v1295 = vsel %vm1290, %v1279, 0
        %v1298 = vsel %vm1290, %v1280, 0
        %v1301 = vsel %vm1290, %v1281, 0
        %v1304 = vsel %vm1290, %v1282, 0
        %v1307 = vsel %vm1290, %v1283, 0
        %v1310 = vsel %vm1290, %v1284, 0
        %v1313 = vsel %vm1290, %v1285, 0
        %vm1315 = vcmask 1045504
        %v1317 = vsel %vm1315, %v1289, 0
        %1319 = vmatprep.subr.mxu0 0.0
        %1320 = vmatpush1.msra.mxu0 %v1286
        %1321 = vmatprep.subr.mxu0 0.0
        %1322 = vmatpush1.msra.mxu0 %v1287
        %1323 = vmatprep.subr.mxu0 0.0
        %1324 = vmatpush1.msra.mxu0 %v1288
        %1325 = vmatprep.subr.mxu0 0.0
        %1326 = vmatpush1.msra.mxu0 %v1317
        %1327 = vmatprep.subr.mxu0 0.0
        %1328 = vmatpush1.msra.mxu0 0.0
        %1329 = vmatprep.subr.mxu0 0.0
        %1330 = vmatpush1.msra.mxu0 0.0
        %1331 = vmatprep.subr.mxu0 0.0
        %1332 = vmatpush1.msra.mxu0 0.0
        %1333 = vmatprep.subr.mxu0 0.0
        %1334 = vmatpush1.msra.mxu0 0.0
        %1335 = vmatprep.subr.mxu0 0.0
        %1336 = vmatpush1.msra.mxu0 0.0
        %1337 = vmatprep.subr.mxu0 0.0
        %1338 = vmatpush1.msra.mxu0 0.0
        %1339 = vmatprep.subr.mxu0 0.0
        %1340 = vmatpush1.msra.mxu0 0.0
        %1341 = vmatprep.subr.mxu0 0.0
        %1342 = vmatpush1.msra.mxu0 0.0
        %1343 = vmatprep.subr.mxu0 0.0
        %1344 = vmatpush1.msra.mxu0 0.0
        %1345 = vmatprep.subr.mxu0 0.0
        %1346 = vmatpush1.msra.mxu0 0.0
        %1347 = vmatprep.subr.mxu0 0.0
        %1348 = vmatpush1.msra.mxu0 0.0
        %1349 = vmatprep.subr.mxu0 0.0
        %1350 = vmatpush1.msra.mxu0 0.0
        %1351 = vmatprep.subr.mxu0 0.0
        %1352 = vmatpush1.msra.mxu0 0.0
        %1353 = vmatprep.subr.mxu0 0.0
        %1354 = vmatpush1.msra.mxu0 0.0
        %1355 = vmatprep.subr.mxu0 0.0
        %1356 = vmatpush1.msra.mxu0 0.0
        %1357 = vmatprep.subr.mxu0 0.0
        %1358 = vmatpush1.msra.mxu0 0.0
        %1359 = vmatprep.subr.mxu0 0.0
        %1360 = vmatpush1.msra.mxu0 0.0
        %1361 = vmatprep.subr.mxu0 0.0
        %1362 = vmatpush1.msra.mxu0 0.0
        %1363 = vmatprep.subr.mxu0 0.0
        %1364 = vmatpush1.msra.mxu0 0.0
        %1365 = vmatprep.subr.mxu0 0.0
        %1366 = vmatpush1.msra.mxu0 0.0
        %1367 = vmatprep.subr.mxu0 0.0
        %1368 = vmatpush1.msra.mxu0 0.0
        %1369 = vmatprep.subr.mxu0 0.0
        %1370 = vmatpush1.msra.mxu0 0.0
        %1371 = vmatprep.subr.mxu0 0.0
        %1372 = vmatpush1.msra.mxu0 0.0
        %1373 = vmatprep.subr.mxu0 0.0
        %1374 = vmatpush1.msra.mxu0 0.0
        %1375 = vmatprep.subr.mxu0 0.0
        %1376 = vmatpush1.msra.mxu0 0.0
        %1377 = vmatprep.subr.mxu0 0.0
        %1378 = vmatpush1.msra.mxu0 0.0
        %1379 = vmatprep.subr.mxu0 0.0
        %1380 = vmatpush1.msra.mxu0 0.0
        %1381 = vmatprep.subr.mxu0 0.0
        %1382 = vmatpush1.msra.mxu0 0.0
        %1383 = vmatprep.mubr.f32.mxu0 0.0
        %1384 = vmatmul.mubr.f32.gmra.mrb[0].mxu0 %v1292
        %v1385 = vpop.f32.mrb[0].mxu0
        %v1386 = vadd.f32 0.0, %v1385
        %v1387 = vpop.f32.mrb[0].mxu0
        %1388 = vmatprep.mubr.f32.mxu0 0.0
        %1389 = vmatmul.mubr.f32.gmra.mrb[0].mxu0 %v1295
        %v1390 = vpop.f32.mrb[0].mxu0
        %v1391 = vadd.f32 0.0, %v1390
        %v1392 = vpop.f32.mrb[0].mxu0
        %1393 = vmatprep.mubr.f32.mxu0 0.0
        %1394 = vmatmul.mubr.f32.gmra.mrb[0].mxu0 %v1298
        %v1395 = vpop.f32.mrb[0].mxu0
        %v1396 = vadd.f32 0.0, %v1395
        %v1397 = vpop.f32.mrb[0].mxu0
        %1398 = vmatprep.mubr.f32.mxu0 0.0
        %1399 = vmatmul.mubr.f32.gmra.mrb[0].mxu0 %v1301
        %v1400 = vpop.f32.mrb[0].mxu0
        %v1401 = vadd.f32 0.0, %v1400
        %v1402 = vpop.f32.mrb[0].mxu0
        %1403 = vmatprep.mubr.f32.mxu0 0.0
        %1404 = vmatmul.mubr.f32.gmra.mrb[0].mxu0 %v1304
        %v1405 = vpop.f32.mrb[0].mxu0
        %v1406 = vadd.f32 0.0, %v1405
        %v1407 = vpop.f32.mrb[0].mxu0
        %1408 = vmatprep.mubr.f32.mxu0 0.0
        %1409 = vmatmul.mubr.f32.gmra.mrb[0].mxu0 %v1307
        %v1410 = vpop.f32.mrb[0].mxu0
        %v1411 = vadd.f32 0.0, %v1410
        %v1412 = vpop.f32.mrb[0].mxu0
        %1413 = vmatprep.mubr.f32.mxu0 0.0
        %1414 = vmatmul.mubr.f32.gmra.mrb[0].mxu0 %v1310
        %v1415 = vpop.f32.mrb[0].mxu0
        %v1416 = vadd.f32 0.0, %v1415
        %v1417 = vpop.f32.mrb[0].mxu0
        %1418 = vmatprep.mubr.f32.mxu0 0.0
        %1419 = vmatmul.mubr.f32.gmra.mrb[0].mxu0 %v1313
        %v1420 = vpop.f32.mrb[0].mxu0
        %v1421 = vadd.f32 0.0, %v1420
        %v1422 = vpop.f32.mrb[0].mxu0
        %1423 = vdwg.mxu0
        %v1424 = vld [vmem:[%s10] sm:$0xff]
        %v1425 = vld [vmem:[%s10 + $0x8] sm:$0xff]
        %v1426 = vld [vmem:[%s10 + $0x10] sm:$0xff]
        %v1427 = vld [vmem:[%s10 + $0x18] sm:$0x3f]
        %v1429 = vsel %vm1315, %v1427, 0
        %1431 = vmatprep.subr.mxu0 0.0
        %1432 = vmatpush1.msra.mxu0 %v1424
        %1433 = vmatprep.subr.mxu0 0.0
        %1434 = vmatpush1.msra.mxu0 %v1425
        %1435 = vmatprep.subr.mxu0 0.0
        %1436 = vmatpush1.msra.mxu0 %v1426
        %1437 = vmatprep.subr.mxu0 0.0
        %1438 = vmatpush1.msra.mxu0 %v1429
        %1439 = vmatprep.subr.mxu0 0.0
        %1440 = vmatpush1.msra.mxu0 0.0
        %1441 = vmatprep.subr.mxu0 0.0
        %1442 = vmatpush1.msra.mxu0 0.0
        %1443 = vmatprep.subr.mxu0 0.0
        %1444 = vmatpush1.msra.mxu0 0.0
        %1445 = vmatprep.subr.mxu0 0.0
        %1446 = vmatpush1.msra.mxu0 0.0
        %1447 = vmatprep.subr.mxu0 0.0
        %1448 = vmatpush1.msra.mxu0 0.0
        %1449 = vmatprep.subr.mxu0 0.0
        %1450 = vmatpush1.msra.mxu0 0.0
        %1451 = vmatprep.subr.mxu0 0.0
        %1452 = vmatpush1.msra.mxu0 0.0
        %1453 = vmatprep.subr.mxu0 0.0
        %1454 = vmatpush1.msra.mxu0 0.0
        %1455 = vmatprep.subr.mxu0 0.0
        %1456 = vmatpush1.msra.mxu0 0.0
        %1457 = vmatprep.subr.mxu0 0.0
        %1458 = vmatpush1.msra.mxu0 0.0
        %1459 = vmatprep.subr.mxu0 0.0
        %1460 = vmatpush1.msra.mxu0 0.0
        %1461 = vmatprep.subr.mxu0 0.0
        %1462 = vmatpush1.msra.mxu0 0.0
        %1463 = vmatprep.subr.mxu0 0.0
        %1464 = vmatpush1.msra.mxu0 0.0
        %1465 = vmatprep.subr.mxu0 0.0
        %1466 = vmatpush1.msra.mxu0 0.0
        %1467 = vmatprep.subr.mxu0 0.0
        %1468 = vmatpush1.msra.mxu0 0.0
        %1469 = vmatprep.subr.mxu0 0.0
        %1470 = vmatpush1.msra.mxu0 0.0
        %1471 = vmatprep.subr.mxu0 0.0
        %1472 = vmatpush1.msra.mxu0 0.0
        %1473 = vmatprep.subr.mxu0 0.0
        %1474 = vmatpush1.msra.mxu0 0.0
        %1475 = vmatprep.subr.mxu0 0.0
        %1476 = vmatpush1.msra.mxu0 0.0
        %1477 = vmatprep.subr.mxu0 0.0
        %1478 = vmatpush1.msra.mxu0 0.0
        %1479 = vmatprep.subr.mxu0 0.0
        %1480 = vmatpush1.msra.mxu0 0.0
        %1481 = vmatprep.subr.mxu0 0.0
        %1482 = vmatpush1.msra.mxu0 0.0
        %1483 = vmatprep.subr.mxu0 0.0
        %1484 = vmatpush1.msra.mxu0 0.0
        %1485 = vmatprep.subr.mxu0 0.0
        %1486 = vmatpush1.msra.mxu0 0.0
        %1487 = vmatprep.subr.mxu0 0.0
        %1488 = vmatpush1.msra.mxu0 0.0
        %1489 = vmatprep.subr.mxu0 0.0
        %1490 = vmatpush1.msra.mxu0 0.0
        %1491 = vmatprep.subr.mxu0 0.0
        %1492 = vmatpush1.msra.mxu0 0.0
        %1493 = vmatprep.subr.mxu0 0.0
        %1494 = vmatpush1.msra.mxu0 0.0
        %1495 = vmatprep.mubr.f32.mxu0 0.0
        %1496 = vmatmul.mubr.f32.gmra.mrb[0].mxu0 %v1292
        %v1497 = vpop.f32.mrb[0].mxu0
        %v1498 = vadd.f32 0.0, %v1497
        %v1499 = vpop.f32.mrb[0].mxu0
        %1500 = vmatprep.mubr.f32.mxu0 0.0
        %1501 = vmatmul.mubr.f32.gmra.mrb[0].mxu0 %v1295
        %v1502 = vpop.f32.mrb[0].mxu0
        %v1503 = vadd.f32 0.0, %v1502
        %v1504 = vpop.f32.mrb[0].mxu0
        %1505 = vmatprep.mubr.f32.mxu0 0.0
        %1506 = vmatmul.mubr.f32.gmra.mrb[0].mxu0 %v1298
        %v1507 = vpop.f32.mrb[0].mxu0
        %v1508 = vadd.f32 0.0, %v1507
        %v1509 = vpop.f32.mrb[0].mxu0
        %1510 = vmatprep.mubr.f32.mxu0 0.0
        %1511 = vmatmul.mubr.f32.gmra.mrb[0].mxu0 %v1301
        %v1512 = vpop.f32.mrb[0].mxu0
        %v1513 = vadd.f32 0.0, %v1512
        %v1514 = vpop.f32.mrb[0].mxu0
        %1515 = vmatprep.mubr.f32.mxu0 0.0
        %1516 = vmatmul.mubr.f32.gmra.mrb[0].mxu0 %v1304
        %v1517 = vpop.f32.mrb[0].mxu0
        %v1518 = vadd.f32 0.0, %v1517
        %v1519 = vpop.f32.mrb[0].mxu0
        %1520 = vmatprep.mubr.f32.mxu0 0.0
        %1521 = vmatmul.mubr.f32.gmra.mrb[0].mxu0 %v1307
        %v1522 = vpop.f32.mrb[0].mxu0
        %v1523 = vadd.f32 0.0, %v1522
        %v1524 = vpop.f32.mrb[0].mxu0
        %1525 = vmatprep.mubr.f32.mxu0 0.0
        %1526 = vmatmul.mubr.f32.gmra.mrb[0].mxu0 %v1310
        %v1527 = vpop.f32.mrb[0].mxu0
        %v1528 = vadd.f32 0.0, %v1527
        %v1529 = vpop.f32.mrb[0].mxu0
        %1530 = vmatprep.mubr.f32.mxu0 0.0
        %1531 = vmatmul.mubr.f32.gmra.mrb[0].mxu0 %v1313
        %v1532 = vpop.f32.mrb[0].mxu0
        %v1533 = vadd.f32 0.0, %v1532
        %v1534 = vpop.f32.mrb[0].mxu0
        %1535 = vdwg.mxu0
        %v1536 = vmax.f32 %v1386, %v1498
        %v1537 = vmax.f32 %v1391, %v1503
        %v1538 = vmax.f32 %v1396, %v1508
        %v1539 = vmax.f32 %v1401, %v1513
        %v1540 = vmax.f32 %v1406, %v1518
        %v1541 = vmax.f32 %v1411, %v1523
        %v1542 = vmax.f32 %v1416, %v1528
        %v1543 = vmax.f32 %v1421, %v1533
        %v1544 = vld [vmem:[%s5] sm:$0xff]
        %v1545 = vld [vmem:[%s5 + $0x8] sm:$0xff]
        %v1546 = vld [vmem:[%s5 + $0x10] sm:$0xff]
        %v1547 = vld [vmem:[%s5 + $0x18] sm:$0xff]
        %v1548 = vld [vmem:[%s5 + $0x20] sm:$0xff]
        %v1549 = vld [vmem:[%s5 + $0x28] sm:$0xff]
        %v1550 = vld [vmem:[%s5 + $0x30] sm:$0xff]
        %v1551 = vld [vmem:[%s5 + $0x38] sm:$0xff]
        %v1552 = vld [vmem:[%s6] sm:$0xff]
        %v1553 = vld [vmem:[%s6 + $0x8] sm:$0xff]
        %v1554 = vld [vmem:[%s6 + $0x10] sm:$0xff]
        %v1555 = vld [vmem:[%s6 + $0x18] sm:$0xff]
        %v1556 = vld [vmem:[%s6 + $0x20] sm:$0xff]
        %v1557 = vld [vmem:[%s6 + $0x28] sm:$0xff]
        %v1558 = vld [vmem:[%s6 + $0x30] sm:$0xff]
        %v1559 = vld [vmem:[%s6 + $0x38] sm:$0xff]
        %1561 = vset.pattern.permute.xlu0 0
        %1562 = vperm.xlu0 %1561, %v1544
        %v1563 = vpop.permute.xlu0 %1562
        %1566 = vset.pattern.permute.xlu0 0
        %1567 = vperm.xlu0 %1566, %v1545
        %v1568 = vpop.permute.xlu0 %1567
        %1571 = vset.pattern.permute.xlu0 0
        %1572 = vperm.xlu0 %1571, %v1546
        %v1573 = vpop.permute.xlu0 %1572
        %1576 = vset.pattern.permute.xlu0 0
        %1577 = vperm.xlu0 %1576, %v1547
        %v1578 = vpop.permute.xlu0 %1577
        %1581 = vset.pattern.permute.xlu0 0
        %1582 = vperm.xlu0 %1581, %v1548
        %v1583 = vpop.permute.xlu0 %1582
        %1586 = vset.pattern.permute.xlu0 0
        %1587 = vperm.xlu0 %1586, %v1549
        %v1588 = vpop.permute.xlu0 %1587
        %1591 = vset.pattern.permute.xlu0 0
        %1592 = vperm.xlu0 %1591, %v1550
        %v1593 = vpop.permute.xlu0 %1592
        %1596 = vset.pattern.permute.xlu0 0
        %1597 = vperm.xlu0 %1596, %v1551
        %v1598 = vpop.permute.xlu0 %1597
        %v1600 = vmul.f32 %v1563, %v1536
        %v1601 = vmul.f32 %v1568, %v1537
        %v1602 = vmul.f32 %v1573, %v1538
        %v1603 = vmul.f32 %v1578, %v1539
        %v1604 = vmul.f32 %v1583, %v1540
        %v1605 = vmul.f32 %v1588, %v1541
        %v1606 = vmul.f32 %v1593, %v1542
        %v1607 = vmul.f32 %v1598, %v1543
        %1608 = vset.pattern.permute.xlu0 1
        %1609 = vperm.xlu0 %1608, %v1544
        %v1610 = vpop.permute.xlu0 %1609
        %1612 = vset.pattern.permute.xlu0 1
        %1613 = vperm.xlu0 %1612, %v1545
        %v1614 = vpop.permute.xlu0 %1613
        %1616 = vset.pattern.permute.xlu0 1
        %1617 = vperm.xlu0 %1616, %v1546
        %v1618 = vpop.permute.xlu0 %1617
        %1620 = vset.pattern.permute.xlu0 1
        %1621 = vperm.xlu0 %1620, %v1547
        %v1622 = vpop.permute.xlu0 %1621
        %1624 = vset.pattern.permute.xlu0 1
        %1625 = vperm.xlu0 %1624, %v1548
        %v1626 = vpop.permute.xlu0 %1625
        %1628 = vset.pattern.permute.xlu0 1
        %1629 = vperm.xlu0 %1628, %v1549
        %v1630 = vpop.permute.xlu0 %1629
        %1632 = vset.pattern.permute.xlu0 1
        %1633 = vperm.xlu0 %1632, %v1550
        %v1634 = vpop.permute.xlu0 %1633
        %1636 = vset.pattern.permute.xlu0 1
        %1637 = vperm.xlu0 %1636, %v1551
        %v1638 = vpop.permute.xlu0 %1637
        %v1640 = vmul.f32 %v1610, %v1536
        %v1641 = vmul.f32 %v1614, %v1537
        %v1642 = vmul.f32 %v1618, %v1538
        %v1643 = vmul.f32 %v1622, %v1539
        %v1644 = vmul.f32 %v1626, %v1540
        %v1645 = vmul.f32 %v1630, %v1541
        %v1646 = vmul.f32 %v1634, %v1542
        %v1647 = vmul.f32 %v1638, %v1543
        %1656 = vrot.lane.b32.xlu0 %v1640, 127
        %v1657 = vpop.permute.xlu0 %1656
        %1658 = vrot.lane.b32.xlu0 %v1641, 127
        %v1659 = vpop.permute.xlu0 %1658
        %1660 = vrot.lane.b32.xlu0 %v1642, 127
        %v1661 = vpop.permute.xlu0 %1660
        %1662 = vrot.lane.b32.xlu0 %v1643, 127
        %v1663 = vpop.permute.xlu0 %1662
        %1664 = vrot.lane.b32.xlu0 %v1644, 127
        %v1665 = vpop.permute.xlu0 %1664
        %1666 = vrot.lane.b32.xlu0 %v1645, 127
        %v1667 = vpop.permute.xlu0 %1666
        %1668 = vrot.lane.b32.xlu0 %v1646, 127
        %v1669 = vpop.permute.xlu0 %1668
        %1670 = vrot.lane.b32.xlu0 %v1647, 127
        %v1671 = vpop.permute.xlu0 %1670
        %v1680 = vadd.f32 %v1600, %v1657
        %v1681 = vadd.f32 %v1601, %v1659
        %v1682 = vadd.f32 %v1602, %v1661
        %v1683 = vadd.f32 %v1603, %v1663
        %v1684 = vadd.f32 %v1604, %v1665
        %v1685 = vadd.f32 %v1605, %v1667
        %v1686 = vadd.f32 %v1606, %v1669
        %v1687 = vadd.f32 %v1607, %v1671
        %1688 = vset.pattern.permute.xlu0 2
        %1689 = vperm.xlu0 %1688, %v1544
        %v1690 = vpop.permute.xlu0 %1689
        %1692 = vset.pattern.permute.xlu0 2
        %1693 = vperm.xlu0 %1692, %v1545
        %v1694 = vpop.permute.xlu0 %1693
        %1696 = vset.pattern.permute.xlu0 2
        %1697 = vperm.xlu0 %1696, %v1546
        %v1698 = vpop.permute.xlu0 %1697
        %1700 = vset.pattern.permute.xlu0 2
        %1701 = vperm.xlu0 %1700, %v1547
        %v1702 = vpop.permute.xlu0 %1701
        %1704 = vset.pattern.permute.xlu0 2
        %1705 = vperm.xlu0 %1704, %v1548
        %v1706 = vpop.permute.xlu0 %1705
        %1708 = vset.pattern.permute.xlu0 2
        %1709 = vperm.xlu0 %1708, %v1549
        %v1710 = vpop.permute.xlu0 %1709
        %1712 = vset.pattern.permute.xlu0 2
        %1713 = vperm.xlu0 %1712, %v1550
        %v1714 = vpop.permute.xlu0 %1713
        %1716 = vset.pattern.permute.xlu0 2
        %1717 = vperm.xlu0 %1716, %v1551
        %v1718 = vpop.permute.xlu0 %1717
        %v1720 = vmul.f32 %v1690, %v1536
        %v1721 = vmul.f32 %v1694, %v1537
        %v1722 = vmul.f32 %v1698, %v1538
        %v1723 = vmul.f32 %v1702, %v1539
        %v1724 = vmul.f32 %v1706, %v1540
        %v1725 = vmul.f32 %v1710, %v1541
        %v1726 = vmul.f32 %v1714, %v1542
        %v1727 = vmul.f32 %v1718, %v1543
        %1736 = vrot.lane.b32.xlu0 %v1720, 126
        %v1737 = vpop.permute.xlu0 %1736
        %1738 = vrot.lane.b32.xlu0 %v1721, 126
        %v1739 = vpop.permute.xlu0 %1738
        %1740 = vrot.lane.b32.xlu0 %v1722, 126
        %v1741 = vpop.permute.xlu0 %1740
        %1742 = vrot.lane.b32.xlu0 %v1723, 126
        %v1743 = vpop.permute.xlu0 %1742
        %1744 = vrot.lane.b32.xlu0 %v1724, 126
        %v1745 = vpop.permute.xlu0 %1744
        %1746 = vrot.lane.b32.xlu0 %v1725, 126
        %v1747 = vpop.permute.xlu0 %1746
        %1748 = vrot.lane.b32.xlu0 %v1726, 126
        %v1749 = vpop.permute.xlu0 %1748
        %1750 = vrot.lane.b32.xlu0 %v1727, 126
        %v1751 = vpop.permute.xlu0 %1750
        %v1760 = vadd.f32 %v1680, %v1737
        %v1761 = vadd.f32 %v1681, %v1739
        %v1762 = vadd.f32 %v1682, %v1741
        %v1763 = vadd.f32 %v1683, %v1743
        %v1764 = vadd.f32 %v1684, %v1745
        %v1765 = vadd.f32 %v1685, %v1747
        %v1766 = vadd.f32 %v1686, %v1749
        %v1767 = vadd.f32 %v1687, %v1751
        %1768 = vset.pattern.permute.xlu0 3
        %1769 = vperm.xlu0 %1768, %v1544
        %v1770 = vpop.permute.xlu0 %1769
        %1772 = vset.pattern.permute.xlu0 3
        %1773 = vperm.xlu0 %1772, %v1545
        %v1774 = vpop.permute.xlu0 %1773
        %1776 = vset.pattern.permute.xlu0 3
        %1777 = vperm.xlu0 %1776, %v1546
        %v1778 = vpop.permute.xlu0 %1777
        %1780 = vset.pattern.permute.xlu0 3
        %1781 = vperm.xlu0 %1780, %v1547
        %v1782 = vpop.permute.xlu0 %1781
        %1784 = vset.pattern.permute.xlu0 3
        %1785 = vperm.xlu0 %1784, %v1548
        %v1786 = vpop.permute.xlu0 %1785
        %1788 = vset.pattern.permute.xlu0 3
        %1789 = vperm.xlu0 %1788, %v1549
        %v1790 = vpop.permute.xlu0 %1789
        %1792 = vset.pattern.permute.xlu0 3
        %1793 = vperm.xlu0 %1792, %v1550
        %v1794 = vpop.permute.xlu0 %1793
        %1796 = vset.pattern.permute.xlu0 3
        %1797 = vperm.xlu0 %1796, %v1551
        %v1798 = vpop.permute.xlu0 %1797
        %v1800 = vmul.f32 %v1770, %v1536
        %v1801 = vmul.f32 %v1774, %v1537
        %v1802 = vmul.f32 %v1778, %v1538
        %v1803 = vmul.f32 %v1782, %v1539
        %v1804 = vmul.f32 %v1786, %v1540
        %v1805 = vmul.f32 %v1790, %v1541
        %v1806 = vmul.f32 %v1794, %v1542
        %v1807 = vmul.f32 %v1798, %v1543
        %1816 = vrot.lane.b32.xlu0 %v1800, 125
        %v1817 = vpop.permute.xlu0 %1816
        %1818 = vrot.lane.b32.xlu0 %v1801, 125
        %v1819 = vpop.permute.xlu0 %1818
        %1820 = vrot.lane.b32.xlu0 %v1802, 125
        %v1821 = vpop.permute.xlu0 %1820
        %1822 = vrot.lane.b32.xlu0 %v1803, 125
        %v1823 = vpop.permute.xlu0 %1822
        %1824 = vrot.lane.b32.xlu0 %v1804, 125
        %v1825 = vpop.permute.xlu0 %1824
        %1826 = vrot.lane.b32.xlu0 %v1805, 125
        %v1827 = vpop.permute.xlu0 %1826
        %1828 = vrot.lane.b32.xlu0 %v1806, 125
        %v1829 = vpop.permute.xlu0 %1828
        %1830 = vrot.lane.b32.xlu0 %v1807, 125
        %v1831 = vpop.permute.xlu0 %1830
        %v1840 = vadd.f32 %v1760, %v1817
        %v1841 = vadd.f32 %v1761, %v1819
        %v1842 = vadd.f32 %v1762, %v1821
        %v1843 = vadd.f32 %v1763, %v1823
        %v1844 = vadd.f32 %v1764, %v1825
        %v1845 = vadd.f32 %v1765, %v1827
        %v1846 = vadd.f32 %v1766, %v1829
        %v1847 = vadd.f32 %v1767, %v1831
        %1848 = vset.pattern.permute.xlu0 4
        %1849 = vperm.xlu0 %1848, %v1544
        %v1850 = vpop.permute.xlu0 %1849
        %1852 = vset.pattern.permute.xlu0 4
        %1853 = vperm.xlu0 %1852, %v1545
        %v1854 = vpop.permute.xlu0 %1853
        %1856 = vset.pattern.permute.xlu0 4
        %1857 = vperm.xlu0 %1856, %v1546
        %v1858 = vpop.permute.xlu0 %1857
        %1860 = vset.pattern.permute.xlu0 4
        %1861 = vperm.xlu0 %1860, %v1547
        %v1862 = vpop.permute.xlu0 %1861
        %1864 = vset.pattern.permute.xlu0 4
        %1865 = vperm.xlu0 %1864, %v1548
        %v1866 = vpop.permute.xlu0 %1865
        %1868 = vset.pattern.permute.xlu0 4
        %1869 = vperm.xlu0 %1868, %v1549
        %v1870 = vpop.permute.xlu0 %1869
        %1872 = vset.pattern.permute.xlu0 4
        %1873 = vperm.xlu0 %1872, %v1550
        %v1874 = vpop.permute.xlu0 %1873
        %1876 = vset.pattern.permute.xlu0 4
        %1877 = vperm.xlu0 %1876, %v1551
        %v1878 = vpop.permute.xlu0 %1877
        %v1880 = vmul.f32 %v1850, %v1536
        %v1881 = vmul.f32 %v1854, %v1537
        %v1882 = vmul.f32 %v1858, %v1538
        %v1883 = vmul.f32 %v1862, %v1539
        %v1884 = vmul.f32 %v1866, %v1540
        %v1885 = vmul.f32 %v1870, %v1541
        %v1886 = vmul.f32 %v1874, %v1542
        %v1887 = vmul.f32 %v1878, %v1543
        %1896 = vrot.lane.b32.xlu0 %v1880, 124
        %v1897 = vpop.permute.xlu0 %1896
        %1898 = vrot.lane.b32.xlu0 %v1881, 124
        %v1899 = vpop.permute.xlu0 %1898
        %1900 = vrot.lane.b32.xlu0 %v1882, 124
        %v1901 = vpop.permute.xlu0 %1900
        %1902 = vrot.lane.b32.xlu0 %v1883, 124
        %v1903 = vpop.permute.xlu0 %1902
        %1904 = vrot.lane.b32.xlu0 %v1884, 124
        %v1905 = vpop.permute.xlu0 %1904
        %1906 = vrot.lane.b32.xlu0 %v1885, 124
        %v1907 = vpop.permute.xlu0 %1906
        %1908 = vrot.lane.b32.xlu0 %v1886, 124
        %v1909 = vpop.permute.xlu0 %1908
        %1910 = vrot.lane.b32.xlu0 %v1887, 124
        %v1911 = vpop.permute.xlu0 %1910
        %v1920 = vadd.f32 %v1840, %v1897
        %v1921 = vadd.f32 %v1841, %v1899
        %v1922 = vadd.f32 %v1842, %v1901
        %v1923 = vadd.f32 %v1843, %v1903
        %v1924 = vadd.f32 %v1844, %v1905
        %v1925 = vadd.f32 %v1845, %v1907
        %v1926 = vadd.f32 %v1846, %v1909
        %v1927 = vadd.f32 %v1847, %v1911
        %1928 = vset.pattern.permute.xlu0 5
        %1929 = vperm.xlu0 %1928, %v1544
        %v1930 = vpop.permute.xlu0 %1929
        %1932 = vset.pattern.permute.xlu0 5
        %1933 = vperm.xlu0 %1932, %v1545
        %v1934 = vpop.permute.xlu0 %1933
        %1936 = vset.pattern.permute.xlu0 5
        %1937 = vperm.xlu0 %1936, %v1546
        %v1938 = vpop.permute.xlu0 %1937
        %1940 = vset.pattern.permute.xlu0 5
        %1941 = vperm.xlu0 %1940, %v1547
        %v1942 = vpop.permute.xlu0 %1941
        %1944 = vset.pattern.permute.xlu0 5
        %1945 = vperm.xlu0 %1944, %v1548
        %v1946 = vpop.permute.xlu0 %1945
        %1948 = vset.pattern.permute.xlu0 5
        %1949 = vperm.xlu0 %1948, %v1549
        %v1950 = vpop.permute.xlu0 %1949
        %1952 = vset.pattern.permute.xlu0 5
        %1953 = vperm.xlu0 %1952, %v1550
        %v1954 = vpop.permute.xlu0 %1953
        %1956 = vset.pattern.permute.xlu0 5
        %1957 = vperm.xlu0 %1956, %v1551
        %v1958 = vpop.permute.xlu0 %1957
        %v1960 = vmul.f32 %v1930, %v1536
        %v1961 = vmul.f32 %v1934, %v1537
        %v1962 = vmul.f32 %v1938, %v1538
        %v1963 = vmul.f32 %v1942, %v1539
        %v1964 = vmul.f32 %v1946, %v1540
        %v1965 = vmul.f32 %v1950, %v1541
        %v1966 = vmul.f32 %v1954, %v1542
        %v1967 = vmul.f32 %v1958, %v1543
        %1976 = vrot.lane.b32.xlu0 %v1960, 123
        %v1977 = vpop.permute.xlu0 %1976
        %1978 = vrot.lane.b32.xlu0 %v1961, 123
        %v1979 = vpop.permute.xlu0 %1978
        %1980 = vrot.lane.b32.xlu0 %v1962, 123
        %v1981 = vpop.permute.xlu0 %1980
        %1982 = vrot.lane.b32.xlu0 %v1963, 123
        %v1983 = vpop.permute.xlu0 %1982
        %1984 = vrot.lane.b32.xlu0 %v1964, 123
        %v1985 = vpop.permute.xlu0 %1984
        %1986 = vrot.lane.b32.xlu0 %v1965, 123
        %v1987 = vpop.permute.xlu0 %1986
        %1988 = vrot.lane.b32.xlu0 %v1966, 123
        %v1989 = vpop.permute.xlu0 %1988
        %1990 = vrot.lane.b32.xlu0 %v1967, 123
        %v1991 = vpop.permute.xlu0 %1990
        %v2000 = vadd.f32 %v1920, %v1977
        %v2001 = vadd.f32 %v1921, %v1979
        %v2002 = vadd.f32 %v1922, %v1981
        %v2003 = vadd.f32 %v1923, %v1983
        %v2004 = vadd.f32 %v1924, %v1985
        %v2005 = vadd.f32 %v1925, %v1987
        %v2006 = vadd.f32 %v1926, %v1989
        %v2007 = vadd.f32 %v1927, %v1991
        %2008 = vset.pattern.permute.xlu0 6
        %2009 = vperm.xlu0 %2008, %v1544
        %v2010 = vpop.permute.xlu0 %2009
        %2012 = vset.pattern.permute.xlu0 6
        %2013 = vperm.xlu0 %2012, %v1545
        %v2014 = vpop.permute.xlu0 %2013
        %2016 = vset.pattern.permute.xlu0 6
        %2017 = vperm.xlu0 %2016, %v1546
        %v2018 = vpop.permute.xlu0 %2017
        %2020 = vset.pattern.permute.xlu0 6
        %2021 = vperm.xlu0 %2020, %v1547
        %v2022 = vpop.permute.xlu0 %2021
        %2024 = vset.pattern.permute.xlu0 6
        %2025 = vperm.xlu0 %2024, %v1548
        %v2026 = vpop.permute.xlu0 %2025
        %2028 = vset.pattern.permute.xlu0 6
        %2029 = vperm.xlu0 %2028, %v1549
        %v2030 = vpop.permute.xlu0 %2029
        %2032 = vset.pattern.permute.xlu0 6
        %2033 = vperm.xlu0 %2032, %v1550
        %v2034 = vpop.permute.xlu0 %2033
        %2036 = vset.pattern.permute.xlu0 6
        %2037 = vperm.xlu0 %2036, %v1551
        %v2038 = vpop.permute.xlu0 %2037
        %v2040 = vmul.f32 %v2010, %v1536
        %v2041 = vmul.f32 %v2014, %v1537
        %v2042 = vmul.f32 %v2018, %v1538
        %v2043 = vmul.f32 %v2022, %v1539
        %v2044 = vmul.f32 %v2026, %v1540
        %v2045 = vmul.f32 %v2030, %v1541
        %v2046 = vmul.f32 %v2034, %v1542
        %v2047 = vmul.f32 %v2038, %v1543
        %2056 = vrot.lane.b32.xlu0 %v2040, 122
        %v2057 = vpop.permute.xlu0 %2056
        %2058 = vrot.lane.b32.xlu0 %v2041, 122
        %v2059 = vpop.permute.xlu0 %2058
        %2060 = vrot.lane.b32.xlu0 %v2042, 122
        %v2061 = vpop.permute.xlu0 %2060
        %2062 = vrot.lane.b32.xlu0 %v2043, 122
        %v2063 = vpop.permute.xlu0 %2062
        %2064 = vrot.lane.b32.xlu0 %v2044, 122
        %v2065 = vpop.permute.xlu0 %2064
        %2066 = vrot.lane.b32.xlu0 %v2045, 122
        %v2067 = vpop.permute.xlu0 %2066
        %2068 = vrot.lane.b32.xlu0 %v2046, 122
        %v2069 = vpop.permute.xlu0 %2068
        %2070 = vrot.lane.b32.xlu0 %v2047, 122
        %v2071 = vpop.permute.xlu0 %2070
        %v2080 = vadd.f32 %v2000, %v2057
        %v2081 = vadd.f32 %v2001, %v2059
        %v2082 = vadd.f32 %v2002, %v2061
        %v2083 = vadd.f32 %v2003, %v2063
        %v2084 = vadd.f32 %v2004, %v2065
        %v2085 = vadd.f32 %v2005, %v2067
        %v2086 = vadd.f32 %v2006, %v2069
        %v2087 = vadd.f32 %v2007, %v2071
        %2089 = vset.pattern.permute.xlu0 0
        %2090 = vperm.xlu0 %2089, %v1552
        %v2091 = vpop.permute.xlu0 %2090
        %2094 = vset.pattern.permute.xlu0 0
        %2095 = vperm.xlu0 %2094, %v1553
        %v2096 = vpop.permute.xlu0 %2095
        %2099 = vset.pattern.permute.xlu0 0
        %2100 = vperm.xlu0 %2099, %v1554
        %v2101 = vpop.permute.xlu0 %2100
        %2104 = vset.pattern.permute.xlu0 0
        %2105 = vperm.xlu0 %2104, %v1555
        %v2106 = vpop.permute.xlu0 %2105
        %2109 = vset.pattern.permute.xlu0 0
        %2110 = vperm.xlu0 %2109, %v1556
        %v2111 = vpop.permute.xlu0 %2110
        %2114 = vset.pattern.permute.xlu0 0
        %2115 = vperm.xlu0 %2114, %v1557
        %v2116 = vpop.permute.xlu0 %2115
        %2119 = vset.pattern.permute.xlu0 0
        %2120 = vperm.xlu0 %2119, %v1558
        %v2121 = vpop.permute.xlu0 %2120
        %2124 = vset.pattern.permute.xlu0 0
        %2125 = vperm.xlu0 %2124, %v1559
        %v2126 = vpop.permute.xlu0 %2125
        %v2128 = vadd.f32 %v2080, %v2091
        %v2129 = vadd.f32 %v2081, %v2096
        %v2130 = vadd.f32 %v2082, %v2101
        %v2131 = vadd.f32 %v2083, %v2106
        %v2132 = vadd.f32 %v2084, %v2111
        %v2133 = vadd.f32 %v2085, %v2116
        %v2134 = vadd.f32 %v2086, %v2121
        %v2135 = vadd.f32 %v2087, %v2126
        %v2136 = vmax.f32 %v2128, 0.0
        %v2137 = vmax.f32 %v2129, 0.0
        %v2138 = vmax.f32 %v2130, 0.0
        %v2139 = vmax.f32 %v2131, 0.0
        %v2140 = vmax.f32 %v2132, 0.0
        %v2141 = vmax.f32 %v2133, 0.0
        %v2142 = vmax.f32 %v2134, 0.0
        %v2143 = vmax.f32 %v2135, 0.0
        %vm2144 = vcmask 89088
        %v2146 = vsel %vm2144, 0.09090909, 0
        %v2149 = vsel %vm2144, %v2136, 0
        %v2152 = vsel %vm2144, %v2137, 0
        %v2155 = vsel %vm2144, %v2138, 0
        %v2158 = vsel %vm2144, %v2139, 0
        %v2161 = vsel %vm2144, %v2140, 0
        %v2164 = vsel %vm2144, %v2141, 0
        %v2167 = vsel %vm2144, %v2142, 0
        %v2170 = vsel %vm2144, %v2143, 0
        %2172 = vmatprep.subr.mxu0 0.0
        %2173 = vmatpush1.xpose.msra.mxu0 %v2149
        %2174 = vmatprep.subr.mxu0 0.0
        %2175 = vmatpush1.xpose.msra.mxu0 %v2152
        %2176 = vmatprep.subr.mxu0 0.0
        %2177 = vmatpush1.xpose.msra.mxu0 %v2155
        %2178 = vmatprep.subr.mxu0 0.0
        %2179 = vmatpush1.xpose.msra.mxu0 %v2158
        %2180 = vmatprep.subr.mxu0 0.0
        %2181 = vmatpush1.xpose.msra.mxu0 %v2161
        %2182 = vmatprep.subr.mxu0 0.0
        %2183 = vmatpush1.xpose.msra.mxu0 %v2164
        %2184 = vmatprep.subr.mxu0 0.0
        %2185 = vmatpush1.xpose.msra.mxu0 %v2167
        %2186 = vmatprep.subr.mxu0 0.0
        %2187 = vmatpush1.xpose.msra.mxu0 %v2170
        %2188 = vmatprep.subr.mxu0 0.0
        %2189 = vmatpush1.xpose.msra.mxu0 0.0
        %2190 = vmatprep.subr.mxu0 0.0
        %2191 = vmatpush1.xpose.msra.mxu0 0.0
        %2192 = vmatprep.subr.mxu0 0.0
        %2193 = vmatpush1.xpose.msra.mxu0 0.0
        %2194 = vmatprep.subr.mxu0 0.0
        %2195 = vmatpush1.xpose.msra.mxu0 0.0
        %2196 = vmatprep.subr.mxu0 0.0
        %2197 = vmatpush1.xpose.msra.mxu0 0.0
        %2198 = vmatprep.subr.mxu0 0.0
        %2199 = vmatpush1.xpose.msra.mxu0 0.0
        %2200 = vmatprep.subr.mxu0 0.0
        %2201 = vmatpush1.xpose.msra.mxu0 0.0
        %2202 = vmatprep.subr.mxu0 0.0
        %2203 = vmatpush1.xpose.msra.mxu0 0.0
        %2204 = vmatprep.subr.mxu0 0.0
        %2205 = vmatpush1.xpose.msra.mxu0 0.0
        %2206 = vmatprep.subr.mxu0 0.0
        %2207 = vmatpush1.xpose.msra.mxu0 0.0
        %2208 = vmatprep.subr.mxu0 0.0
        %2209 = vmatpush1.xpose.msra.mxu0 0.0
        %2210 = vmatprep.subr.mxu0 0.0
        %2211 = vmatpush1.xpose.msra.mxu0 0.0
        %2212 = vmatprep.subr.mxu0 0.0
        %2213 = vmatpush1.xpose.msra.mxu0 0.0
        %2214 = vmatprep.subr.mxu0 0.0
        %2215 = vmatpush1.xpose.msra.mxu0 0.0
        %2216 = vmatprep.subr.mxu0 0.0
        %2217 = vmatpush1.xpose.msra.mxu0 0.0
        %2218 = vmatprep.subr.mxu0 0.0
        %2219 = vmatpush1.xpose.msra.mxu0 0.0
        %2220 = vmatprep.subr.mxu0 0.0
        %2221 = vmatpush1.xpose.msra.mxu0 0.0
        %2222 = vmatprep.subr.mxu0 0.0
        %2223 = vmatpush1.xpose.msra.mxu0 0.0
        %2224 = vmatprep.subr.mxu0 0.0
        %2225 = vmatpush1.xpose.msra.mxu0 0.0
        %2226 = vmatprep.subr.mxu0 0.0
        %2227 = vmatpush1.xpose.msra.mxu0 0.0
        %2228 = vmatprep.subr.mxu0 0.0
        %2229 = vmatpush1.xpose.msra.mxu0 0.0
        %2230 = vmatprep.subr.mxu0 0.0
        %2231 = vmatpush1.xpose.msra.mxu0 0.0
        %2232 = vmatprep.subr.mxu0 0.0
        %2233 = vmatpush1.xpose.msra.mxu0 0.0
        %2234 = vmatprep.subr.mxu0 0.0
        %2235 = vmatpush1.xpose.msra.mxu0 0.0
        %2236 = vmatprep.mubr.f32.mxu0 0.0
        %2237 = vmatmul.mubr.f32.gmra.mrb[0].mxu0 %v2146
        %v2238 = vpop.f32.mrb[0].mxu0
        %v2239 = vadd.f32 0.0, %v2238
        %v2240 = vpop.f32.mrb[0].mxu0
        %2241 = vdwg.mxu0
        %vm2242 = vcmask 516096
        %2243 = vst.msk [vmem:[%s376] sm:$0x1] %vm2242, %v2239
        %s2244 = sand.u32 %s269, 1
        %s2245 = scalar_lea.sflag [#allocation3], %s2244
        %s2246 = sand.u32 %s269, 1
        %s2247 = scalar_lea.vmem [#allocation2], %s2246
        // Predicated region
        $region65: #{tpu_custom_call.1} parent=63 // pred_check
          %p2248 = pneg %p279
        $region66: #{tpu_custom_call.1} parent=63 // pred_check_branch
          %2250 = sbr.rel (%p2248) target = $region68
        $region67: #{tpu_custom_call.1} parent=63 // pred_region
          %s2252 = ssub.s32 16, 16
          %2253 = vsyncadd %s2245, %s2252
          %s2254 = smul.addr %s25, 16
          %s2255 = scalar_lea.hbm %s11, %s2254
          %s2257 = sshll.u32 %s2247, 4
          %s2258 = int_to_ptr.vmem [resolvable:$true] %s2257
          %2260 = dma.vmem_to_hbm [thread:$0]  %s2258, 16, %s2255, %s2245
        $region68: #{tpu_custom_call.1} parent=63 // pred_fallthru
          _
      $region64: #{tpu_custom_call.1} parent=5 // pred_fallthru
        _
      %p2261 = scmp.le.s32.totalorder 2, %s20
      // Predicated region
      $region69: #{tpu_custom_call.1} parent=5 // pred_check
        %p2262 = pneg %p2261
      $region70: #{tpu_custom_call.1} parent=5 // pred_check_branch
        %2264 = sbr.rel (%p2262) target = $region72
      $region71: #{tpu_custom_call.1} parent=5 // pred_region
        %s2265 = ssub.s32 %s20, 2
        // Predicated region
        $region73: #{tpu_custom_call.1} parent=71 // pred_check
          %p2266 = pneg %p285
        $region74: #{tpu_custom_call.1} parent=71 // pred_check_branch
          %2268 = sbr.rel (%p2266) target = $region76
        $region75: #{tpu_custom_call.1} parent=71 // pred_region
          %s2269 = sand.u32 %s270, 1
          %s2270 = scalar_lea.sflag [#allocation3], %s2269
          %s2271 = sand.u32 %s270, 1
          %s2272 = scalar_lea.vmem [#allocation2], %s2271
          %2273 = dma.done %s2270, 16
        $region76: #{tpu_custom_call.1} parent=71 // pred_fallthru
          _
      $region72: #{tpu_custom_call.1} parent=5 // pred_fallthru
        _
    $region6: #{tpu_custom_call.1} parent=1 // loop_footer
      %s24 = sadd.s32 1, %s20
    $region7: #{tpu_custom_call.1} parent=1 // loop_footer_branch
      %19 = sbr.rel target = $region3
    $region8: #{tpu_custom_call.1} parent=1 // loop_exit
      _
    %2274 = vsyncpa [#allocation3], 1
    %s2275 = scalar_lea.sflag [#allocation3], 1
    %2276 = vsyncpa %s2275, 1

</llo_original>
